<compile_context>
chip_gen: v6e
topology: v6e:2x2x1
jax: 0.10.0
libtpu: 0.0.40
codegen_flags: <defaults>
</compile_context>

<pallas_src>
import functools

import jax
import jax.numpy as jnp
from jax.experimental import pallas as pl
from jax.experimental.pallas import tpu as pltpu  # noqa: F401  (TPU compiler params if needed)

_EPS = 1e-5


# ---------------------------------------------------------------------------
# in-kernel helpers
# ---------------------------------------------------------------------------
def _sigmoid(v):
    # explicit logistic: exp + div lower cleanly in both Mosaic and interpret mode
    return 1.0 / (1.0 + jnp.exp(-v))


def _shift1(x):
    """left[i,l] = x[i,l-1] (0 at l=0) ; right[i,l] = x[i,l+1] (0 at l=L-1)."""
    zero = jnp.zeros((x.shape[0], 1), x.dtype)
    left = jnp.concatenate([zero, x[:, :-1]], axis=1)
    right = jnp.concatenate([x[:, 1:], zero], axis=1)
    return left, right


# ---------------------------------------------------------------------------
# fused kernel: BiFusion_block + Residual + final nn.Linear(194, 5)
# ---------------------------------------------------------------------------
def _transfuse_kernel(g_ref, x_ref, w32_ref, wconv_ref, wmix_ref, wfc_ref,
                      bcol_ref, rvec_ref, out_ref):
    g = g_ref[...]            # (32, 64)   CNN-branch features (x_u)
    x = x_ref[...]            # (32, 64)   transformer-branch features (x_b)
    w32 = w32_ref[...]        # (184, 32)  K=32 weights: wg | wx | fc1 | skip | conv1
    wmix = wmix_ref[...]      # (80, 48)   fc2 | conv2(k=3, stacked) | conv3
    bcol = bcol_ref[...]      # (328, 1)   all conv biases (column stack)
    rv = rvec_ref[...]        # (16, 256)  folded-BN scale/shift rows + fc bias

    dot = functools.partial(jnp.dot, preferred_element_type=jnp.float32)

    # ---- W_g(g), W_x(x): 1x1 conv + eval BatchNorm1d(64) (per-column affine) -------------
    wg = dot(w32[0:64], g) + bcol[0:64]
    wg = wg * rv[0:1, 0:64] + rv[1:2, 0:64]
    wx = dot(w32[64:128], x) + bcol[64:128]
    wx = wx * rv[2:3, 0:64] + rv[3:4, 0:64]

    # ---- bp = W(W_g * W_x): k=3 conv as ONE stacked matmul (K=192) + BN + ReLU -----------
    prod = wg * wx                                              # (64, 64)
    left, right = _shift1(prod)
    stacked = jnp.concatenate([left, prod, right], axis=0)      # (192, 64)
    bp = dot(wconv_ref[...], stacked) + bcol[128:192]           # (64, 64)
    bp = jnp.maximum(bp * rv[4:5, 0:64] + rv[5:6, 0:64], 0.0)
    # wconv rows are pre-permuted: rows 0:32 = even output channels, 32:64 = odd,
    # so bp[0:32] / bp[32:64] are exactly the two halves of bp.reshape(32, 128).

    # ---- ChannelPool(g) -> sigmoid  (32, 2) ----------------------------------------------
    gp = _sigmoid(jnp.concatenate(
        [jnp.max(g, axis=1, keepdims=True),
         jnp.mean(g, axis=1, keepdims=True)], axis=1))

    # ---- channel gate on x: fc1 -> ReLU -> fc2 -> sigmoid  (32, 64) ----------------------
    h = jnp.maximum(dot(w32[128:136], x) + bcol[192:200], 0.0)      # (8, 64)
    xs = _sigmoid(dot(wmix[0:32, 0:8], h) + bcol[200:232])          # (32, 64)

    # ---- fuse = torch.cat([gp, xs, bp.reshape(32, -1)], dim=1)  -> (32, 194) -------------
    fuse = jnp.concatenate([gp, xs, bp[0:32], bp[32:64]], axis=1)

    # ---- Residual(128, 32) ----------------------------------------------------------------
    residual = dot(w32[136:168], fuse) + bcol[232:264]              # skip_layer, (32, 194)

    out = jnp.maximum(fuse * rv[6:7, 0:194] + rv[7:8, 0:194], 0.0)      # bn1 + relu
    out = dot(w32[168:184], out) + bcol[264:280]                        # conv1, (16, 194)

    out = jnp.maximum(out * rv[8:9, 0:194] + rv[9:10, 0:194], 0.0)      # bn2 + relu
    l2, r2 = _shift1(out)
    st2 = jnp.concatenate([l2, out, r2], axis=0)                        # (48, 194)
    out = dot(wmix[32:48, :], st2) + bcol[280:296]                      # conv2 (k=3), (16, 194)

    out = jnp.maximum(out * rv[10:11, 0:194] + rv[11:12, 0:194], 0.0)   # bn3 + relu
    out = dot(wmix[48:80, 0:16], out) + bcol[296:328]                   # conv3, (32, 194)

    x_c = out + residual                                                # (32, 194)

    # ---- map_x = fc(x_c): nn.Linear(194, 5)  (dropouts are identity in eval mode) --------
    out_ref[...] = dot(x_c, wfc_ref[...]) + rv[12:13, 0:5]


# ---------------------------------------------------------------------------
# wrapper
# ---------------------------------------------------------------------------
@jax.jit
def transfuse_s_forward(x_u, x_b, pk):
    """up_c (BiFusion_block) + final fc of TransFuse_S, given the two branch features."""
    return pl.pallas_call(
        _transfuse_kernel,
        out_shape=jax.ShapeDtypeStruct((32, 5), jnp.float32),
    )(x_u, x_b, pk['w32'], pk['wconv'], pk['wmix'], pk['wfc'], pk['bcol'], pk['rvec'])


# ---------------------------------------------------------------------------
# host-side parameter prep: fold eval-BN, pack everything into 6 arrays
# ---------------------------------------------------------------------------
def _bn_fold(bn):
    gamma, beta, mean, var = bn
    scale = gamma * jax.lax.rsqrt(var + _EPS)
    shift = beta - mean * scale
    return scale, shift


def _row256(v):
    r = jnp.zeros((256,), jnp.float32)
    return r.at[: v.shape[0]].set(v)


def pack_params(p):
    def taps_cat(w3):   # Conv1d weight (Cout, Cin, 3) -> (Cout, 3*Cin) as [tap0 | tap1 | tap2]
        return jnp.concatenate([w3[:, :, 0], w3[:, :, 1], w3[:, :, 2]], axis=1)

    # K=32 weights, row-stacked at multiple-of-8 offsets: wg[0:64] wx[64:128] fc1[128:136]
    # skip[136:168] conv1[168:184]
    w32 = jnp.concatenate(
        [p['wg_w'], p['wx_w'], p['fc1_w'], p['skip_w'], p['c1_w']], axis=0)        # (184, 32)

    # W (k=3) conv weight, taps concatenated, output channels permuted even-then-odd so the
    # kernel never has to do bp.reshape(32, -1).
    wcat = taps_cat(p['w_k3'])                                                     # (64, 192)
    wconv = jnp.concatenate([wcat[0::2], wcat[1::2]], axis=0)                      # (64, 192)

    wmix = jnp.zeros((80, 48), jnp.float32)
    wmix = wmix.at[0:32, 0:8].set(p['fc2_w'])
    wmix = wmix.at[32:48, :].set(taps_cat(p['c2_k3']))
    wmix = wmix.at[48:80, 0:16].set(p['c3_w'])                                     # (80, 48)

    wfc = p['fc_w'].T                                                              # (194, 5)

    w_b_perm = jnp.concatenate([p['w_b'][0::2], p['w_b'][1::2]])
    bcol = jnp.concatenate([
        p['wg_b'], p['wx_b'], w_b_perm,
        p['fc1_b'], p['fc2_b'],
        p['skip_b'], p['c1_b'], p['c2_b'], p['c3_b'],
    ])[:, None]                                                                    # (328, 1)

    rows = []
    for bn in (p['wg_bn'], p['wx_bn'], p['w_bn'], p['bn1'], p['bn2'], p['bn3']):
        s, t = _bn_fold(bn)
        rows += [_row256(s), _row256(t)]
    rows.append(_row256(p['fc_b']))
    rows += [jnp.zeros((256,), jnp.float32)] * 3
    rvec = jnp.stack(rows, axis=0)                                                 # (16, 256)

    return dict(w32=w32, wconv=wconv, wmix=wmix, wfc=wfc, bcol=bcol, rvec=rvec)


# ---------------------------------------------------------------------------
# deterministic parameter init (shapes follow the module's __init__)
# ---------------------------------------------------------------------------
def init_params(key):
    keys = iter(jax.random.split(key, 64))

    def w(shape, scale=0.1):
        return (scale * jax.random.normal(next(keys), shape)).astype(jnp.float32)

    def bn(c):  # [gamma, beta, running_mean, running_var]
        return [1.0 + w((c,), 0.2), w((c,), 0.1), w((c,), 0.1), 1.0 + jnp.abs(w((c,), 0.2))]

    p = {}
    # BiFusion_block(ch_1=32, ch_2=32, r_2=4, ch_int=64, ch_out=32)
    p['wg_w'] = w((64, 32)); p['wg_b'] = w((64,)); p['wg_bn'] = bn(64)    # W_g (1x1, bn)
    p['wx_w'] = w((64, 32)); p['wx_b'] = w((64,)); p['wx_bn'] = bn(64)    # W_x (1x1, bn)
    p['w_k3'] = w((64, 64, 3)); p['w_b'] = w((64,)); p['w_bn'] = bn(64)   # W   (k=3, bn, relu)
    p['fc1_w'] = w((8, 32)); p['fc1_b'] = w((8,))                         # fc1 (32 -> 8)
    p['fc2_w'] = w((32, 8)); p['fc2_b'] = w((32,))                        # fc2 (8 -> 32)
    # Residual(128, 32)
    p['skip_w'] = w((32, 32)); p['skip_b'] = w((32,))
    p['bn1'] = bn(194); p['bn2'] = bn(194); p['bn3'] = bn(194)
    p['c1_w'] = w((16, 32)); p['c1_b'] = w((16,))
    p['c2_k3'] = w((16, 16, 3)); p['c2_b'] = w((16,))
    p['c3_w'] = w((32, 16)); p['c3_b'] = w((32,))
    # final fc = nn.Linear(194, 5)
    p['fc_w'] = w((5, 194)); p['fc_b'] = w((5,))
    return p


if __name__ == "__main__":
    key = jax.random.PRNGKey(0)
    k_u, k_b, k_p = jax.random.split(key, 3)

    # Branch features feeding up_c — shapes forced by the module definition.
    x_u = jax.random.normal(k_u, (32, 64), dtype=jnp.float32)   # CNN branch
    x_b = jax.random.normal(k_b, (32, 64), dtype=jnp.float32)   # transformer branch

    params = init_params(k_p)
    packed = pack_params(params)          # one-time host-side prep (BN folding + packing)

    map_x = transfuse_s_forward(x_u, x_b, packed)
    jax.block_until_ready(map_x)
    assert map_x.shape == (32, 5) and map_x.dtype == jnp.float32
    print("KERNEL_OK")
</pallas_src>

<mosaic_0001>
module attributes {stable_mosaic.version = 11 : i64} {
  func.func @_transfuse_kernel(%arg0: memref<32x64xf32, #tpu.memory_space<vmem>>, %arg1: memref<32x64xf32, #tpu.memory_space<vmem>>, %arg2: memref<184x32xf32, #tpu.memory_space<vmem>>, %arg3: memref<64x192xf32, #tpu.memory_space<vmem>>, %arg4: memref<80x48xf32, #tpu.memory_space<vmem>>, %arg5: memref<194x5xf32, #tpu.memory_space<vmem>>, %arg6: memref<328x1xf32, #tpu.memory_space<vmem>>, %arg7: memref<16x256xf32, #tpu.memory_space<vmem>>, %arg8: memref<32x5xf32, #tpu.memory_space<vmem>>) attributes {dimension_semantics = [], scalar_prefetch = 0 : i64, scratch_operands = 0 : i64, tpu.core_type = #tpu.core_type<tc>} {
    %c0 = arith.constant 0 : index
    %c0_0 = arith.constant 0 : index
    %0 = vector.load %arg0[%c0, %c0_0] : memref<32x64xf32, #tpu.memory_space<vmem>>, vector<32x64xf32>
    %c0_1 = arith.constant 0 : index
    %c0_2 = arith.constant 0 : index
    %1 = vector.load %arg1[%c0_1, %c0_2] : memref<32x64xf32, #tpu.memory_space<vmem>>, vector<32x64xf32>
    %c0_3 = arith.constant 0 : index
    %c0_4 = arith.constant 0 : index
    %2 = vector.load %arg2[%c0_3, %c0_4] : memref<184x32xf32, #tpu.memory_space<vmem>>, vector<184x32xf32>
    %c0_5 = arith.constant 0 : index
    %c0_6 = arith.constant 0 : index
    %3 = vector.load %arg4[%c0_5, %c0_6] : memref<80x48xf32, #tpu.memory_space<vmem>>, vector<80x48xf32>
    %c0_7 = arith.constant 0 : index
    %c0_8 = arith.constant 0 : index
    %4 = vector.load %arg6[%c0_7, %c0_8] : memref<328x1xf32, #tpu.memory_space<vmem>>, vector<328x1xf32>
    %c0_9 = arith.constant 0 : index
    %c0_10 = arith.constant 0 : index
    %5 = vector.load %arg7[%c0_9, %c0_10] : memref<16x256xf32, #tpu.memory_space<vmem>>, vector<16x256xf32>
    %6 = vector.extract_strided_slice %2 {offsets = [0, 0], sizes = [64, 32], strides = [1, 1]} : vector<184x32xf32> to vector<64x32xf32>
    %cst = arith.constant dense<0.000000e+00> : vector<64x64xf32>
    %7 = tpu.matmul %6, %0, %cst {dimension_numbers = #tpu.dot_dimension_numbers<[1], [0], [0], [1], [0, 0, 1, 1], [], []>} : vector<64x32xf32>, vector<32x64xf32>, vector<64x64xf32> -> vector<64x64xf32>
    %8 = vector.extract_strided_slice %4 {offsets = [0, 0], sizes = [64, 1], strides = [1, 1]} : vector<328x1xf32> to vector<64x1xf32>
    %9 = vector.broadcast %8 : vector<64x1xf32> to vector<64x64xf32>
    %10 = arith.addf %7, %9 : vector<64x64xf32>
    %11 = vector.extract_strided_slice %5 {offsets = [0, 0], sizes = [1, 64], strides = [1, 1]} : vector<16x256xf32> to vector<1x64xf32>
    %12 = vector.broadcast %11 : vector<1x64xf32> to vector<64x64xf32>
    %13 = arith.mulf %10, %12 : vector<64x64xf32>
    %14 = vector.extract_strided_slice %5 {offsets = [1, 0], sizes = [1, 64], strides = [1, 1]} : vector<16x256xf32> to vector<1x64xf32>
    %15 = vector.broadcast %14 : vector<1x64xf32> to vector<64x64xf32>
    %16 = arith.addf %13, %15 : vector<64x64xf32>
    %17 = vector.extract_strided_slice %2 {offsets = [64, 0], sizes = [64, 32], strides = [1, 1]} : vector<184x32xf32> to vector<64x32xf32>
    %cst_11 = arith.constant dense<0.000000e+00> : vector<64x64xf32>
    %18 = tpu.matmul %17, %1, %cst_11 {dimension_numbers = #tpu.dot_dimension_numbers<[1], [0], [0], [1], [0, 0, 1, 1], [], []>} : vector<64x32xf32>, vector<32x64xf32>, vector<64x64xf32> -> vector<64x64xf32>
    %19 = vector.extract_strided_slice %4 {offsets = [64, 0], sizes = [64, 1], strides = [1, 1]} : vector<328x1xf32> to vector<64x1xf32>
    %20 = vector.broadcast %19 : vector<64x1xf32> to vector<64x64xf32>
    %21 = arith.addf %18, %20 : vector<64x64xf32>
    %22 = vector.extract_strided_slice %5 {offsets = [2, 0], sizes = [1, 64], strides = [1, 1]} : vector<16x256xf32> to vector<1x64xf32>
    %23 = vector.broadcast %22 : vector<1x64xf32> to vector<64x64xf32>
    %24 = arith.mulf %21, %23 : vector<64x64xf32>
    %25 = vector.extract_strided_slice %5 {offsets = [3, 0], sizes = [1, 64], strides = [1, 1]} : vector<16x256xf32> to vector<1x64xf32>
    %26 = vector.broadcast %25 : vector<1x64xf32> to vector<64x64xf32>
    %27 = arith.addf %24, %26 : vector<64x64xf32>
    %28 = arith.mulf %16, %27 : vector<64x64xf32>
    %cst_12 = arith.constant 0.000000e+00 : f32
    %29 = vector.broadcast %cst_12 : f32 to vector<64x1xf32>
    %30 = vector.extract_strided_slice %28 {offsets = [0, 0], sizes = [64, 63], strides = [1, 1]} : vector<64x64xf32> to vector<64x63xf32>
    %31 = tpu.concatenate %29, %30 in 1 : vector<64x1xf32>, vector<64x63xf32> -> vector<64x64xf32>
    %32 = vector.extract_strided_slice %28 {offsets = [0, 1], sizes = [64, 63], strides = [1, 1]} : vector<64x64xf32> to vector<64x63xf32>
    %33 = tpu.concatenate %32, %29 in 1 : vector<64x63xf32>, vector<64x1xf32> -> vector<64x64xf32>
    %34 = tpu.concatenate %31, %28, %33 in 0 : vector<64x64xf32>, vector<64x64xf32>, vector<64x64xf32> -> vector<192x64xf32>
    %c0_13 = arith.constant 0 : index
    %c0_14 = arith.constant 0 : index
    %35 = vector.load %arg3[%c0_13, %c0_14] : memref<64x192xf32, #tpu.memory_space<vmem>>, vector<64x192xf32>
    %cst_15 = arith.constant dense<0.000000e+00> : vector<64x64xf32>
    %36 = tpu.matmul %35, %34, %cst_15 {dimension_numbers = #tpu.dot_dimension_numbers<[1], [0], [0], [1], [0, 0, 1, 1], [], []>} : vector<64x192xf32>, vector<192x64xf32>, vector<64x64xf32> -> vector<64x64xf32>
    %37 = vector.extract_strided_slice %4 {offsets = [128, 0], sizes = [64, 1], strides = [1, 1]} : vector<328x1xf32> to vector<64x1xf32>
    %38 = vector.broadcast %37 : vector<64x1xf32> to vector<64x64xf32>
    %39 = arith.addf %36, %38 : vector<64x64xf32>
    %40 = vector.extract_strided_slice %5 {offsets = [4, 0], sizes = [1, 64], strides = [1, 1]} : vector<16x256xf32> to vector<1x64xf32>
    %41 = vector.broadcast %40 : vector<1x64xf32> to vector<64x64xf32>
    %42 = arith.mulf %39, %41 : vector<64x64xf32>
    %43 = vector.extract_strided_slice %5 {offsets = [5, 0], sizes = [1, 64], strides = [1, 1]} : vector<16x256xf32> to vector<1x64xf32>
    %44 = vector.broadcast %43 : vector<1x64xf32> to vector<64x64xf32>
    %45 = arith.addf %42, %44 : vector<64x64xf32>
    %cst_16 = arith.constant 0.000000e+00 : f32
    %46 = vector.broadcast %cst_16 : f32 to vector<64x64xf32>
    %47 = arith.maximumf %45, %46 : vector<64x64xf32>
    %cst_17 = arith.constant dense<0xFF800000> : vector<32xf32>
    %48 = vector.multi_reduction <maximumf>, %0, %cst_17 [1] : vector<32x64xf32> to vector<32xf32>
    %49 = vector.shape_cast %48 : vector<32xf32> to vector<32x1xf32>
    %cst_18 = arith.constant dense<0.000000e+00> : vector<32xf32>
    %50 = vector.multi_reduction <add>, %0, %cst_18 [1] : vector<32x64xf32> to vector<32xf32>
    %51 = vector.shape_cast %50 : vector<32xf32> to vector<32x1xf32>
    %cst_19 = arith.constant 6.400000e+01 : f32
    %52 = vector.broadcast %cst_19 : f32 to vector<32x1xf32>
    %53 = arith.divf %51, %52 : vector<32x1xf32>
    %54 = tpu.concatenate %49, %53 in 1 : vector<32x1xf32>, vector<32x1xf32> -> vector<32x2xf32>
    %cst_20 = arith.constant 0.000000e+00 : f32
    %55 = vector.broadcast %cst_20 : f32 to vector<32x2xf32>
    %56 = arith.subf %55, %54 : vector<32x2xf32>
    %57 = math.exp %56 : vector<32x2xf32>
    %cst_21 = arith.constant 1.000000e+00 : f32
    %58 = vector.broadcast %cst_21 : f32 to vector<32x2xf32>
    %59 = arith.addf %58, %57 : vector<32x2xf32>
    %cst_22 = arith.constant 1.000000e+00 : f32
    %60 = vector.broadcast %cst_22 : f32 to vector<32x2xf32>
    %61 = arith.divf %60, %59 : vector<32x2xf32>
    %62 = vector.extract_strided_slice %2 {offsets = [128, 0], sizes = [8, 32], strides = [1, 1]} : vector<184x32xf32> to vector<8x32xf32>
    %cst_23 = arith.constant dense<0.000000e+00> : vector<8x64xf32>
    %63 = tpu.matmul %62, %1, %cst_23 {dimension_numbers = #tpu.dot_dimension_numbers<[1], [0], [0], [1], [0, 0, 1, 1], [], []>} : vector<8x32xf32>, vector<32x64xf32>, vector<8x64xf32> -> vector<8x64xf32>
    %64 = vector.extract_strided_slice %4 {offsets = [192, 0], sizes = [8, 1], strides = [1, 1]} : vector<328x1xf32> to vector<8x1xf32>
    %65 = vector.broadcast %64 : vector<8x1xf32> to vector<8x64xf32>
    %66 = arith.addf %63, %65 : vector<8x64xf32>
    %cst_24 = arith.constant 0.000000e+00 : f32
    %67 = vector.broadcast %cst_24 : f32 to vector<8x64xf32>
    %68 = arith.maximumf %66, %67 : vector<8x64xf32>
    %69 = vector.extract_strided_slice %3 {offsets = [0, 0], sizes = [32, 8], strides = [1, 1]} : vector<80x48xf32> to vector<32x8xf32>
    %cst_25 = arith.constant dense<0.000000e+00> : vector<32x64xf32>
    %70 = tpu.matmul %69, %68, %cst_25 {dimension_numbers = #tpu.dot_dimension_numbers<[1], [0], [0], [1], [0, 0, 1, 1], [], []>} : vector<32x8xf32>, vector<8x64xf32>, vector<32x64xf32> -> vector<32x64xf32>
    %71 = vector.extract_strided_slice %4 {offsets = [200, 0], sizes = [32, 1], strides = [1, 1]} : vector<328x1xf32> to vector<32x1xf32>
    %72 = vector.broadcast %71 : vector<32x1xf32> to vector<32x64xf32>
    %73 = arith.addf %70, %72 : vector<32x64xf32>
    %cst_26 = arith.constant 0.000000e+00 : f32
    %74 = vector.broadcast %cst_26 : f32 to vector<32x64xf32>
    %75 = arith.subf %74, %73 : vector<32x64xf32>
    %76 = math.exp %75 : vector<32x64xf32>
    %cst_27 = arith.constant 1.000000e+00 : f32
    %77 = vector.broadcast %cst_27 : f32 to vector<32x64xf32>
    %78 = arith.addf %77, %76 : vector<32x64xf32>
    %cst_28 = arith.constant 1.000000e+00 : f32
    %79 = vector.broadcast %cst_28 : f32 to vector<32x64xf32>
    %80 = arith.divf %79, %78 : vector<32x64xf32>
    %81 = vector.extract_strided_slice %47 {offsets = [0, 0], sizes = [32, 64], strides = [1, 1]} : vector<64x64xf32> to vector<32x64xf32>
    %82 = vector.extract_strided_slice %47 {offsets = [32, 0], sizes = [32, 64], strides = [1, 1]} : vector<64x64xf32> to vector<32x64xf32>
    %83 = tpu.concatenate %61, %80, %81, %82 in 1 : vector<32x2xf32>, vector<32x64xf32>, vector<32x64xf32>, vector<32x64xf32> -> vector<32x194xf32>
    %84 = vector.extract_strided_slice %2 {offsets = [136, 0], sizes = [32, 32], strides = [1, 1]} : vector<184x32xf32> to vector<32x32xf32>
    %cst_29 = arith.constant dense<0.000000e+00> : vector<32x194xf32>
    %85 = tpu.matmul %84, %83, %cst_29 {dimension_numbers = #tpu.dot_dimension_numbers<[1], [0], [0], [1], [0, 0, 1, 1], [], []>} : vector<32x32xf32>, vector<32x194xf32>, vector<32x194xf32> -> vector<32x194xf32>
    %86 = vector.extract_strided_slice %4 {offsets = [232, 0], sizes = [32, 1], strides = [1, 1]} : vector<328x1xf32> to vector<32x1xf32>
    %87 = vector.broadcast %86 : vector<32x1xf32> to vector<32x194xf32>
    %88 = arith.addf %85, %87 : vector<32x194xf32>
    %89 = vector.extract_strided_slice %5 {offsets = [6, 0], sizes = [1, 194], strides = [1, 1]} : vector<16x256xf32> to vector<1x194xf32>
    %90 = vector.broadcast %89 : vector<1x194xf32> to vector<32x194xf32>
    %91 = arith.mulf %83, %90 : vector<32x194xf32>
    %92 = vector.extract_strided_slice %5 {offsets = [7, 0], sizes = [1, 194], strides = [1, 1]} : vector<16x256xf32> to vector<1x194xf32>
    %93 = vector.broadcast %92 : vector<1x194xf32> to vector<32x194xf32>
    %94 = arith.addf %91, %93 : vector<32x194xf32>
    %cst_30 = arith.constant 0.000000e+00 : f32
    %95 = vector.broadcast %cst_30 : f32 to vector<32x194xf32>
    %96 = arith.maximumf %94, %95 : vector<32x194xf32>
    %97 = vector.extract_strided_slice %2 {offsets = [168, 0], sizes = [16, 32], strides = [1, 1]} : vector<184x32xf32> to vector<16x32xf32>
    %cst_31 = arith.constant dense<0.000000e+00> : vector<16x194xf32>
    %98 = tpu.matmul %97, %96, %cst_31 {dimension_numbers = #tpu.dot_dimension_numbers<[1], [0], [0], [1], [0, 0, 1, 1], [], []>} : vector<16x32xf32>, vector<32x194xf32>, vector<16x194xf32> -> vector<16x194xf32>
    %99 = vector.extract_strided_slice %4 {offsets = [264, 0], sizes = [16, 1], strides = [1, 1]} : vector<328x1xf32> to vector<16x1xf32>
    %100 = vector.broadcast %99 : vector<16x1xf32> to vector<16x194xf32>
    %101 = arith.addf %98, %100 : vector<16x194xf32>
    %102 = vector.extract_strided_slice %5 {offsets = [8, 0], sizes = [1, 194], strides = [1, 1]} : vector<16x256xf32> to vector<1x194xf32>
    %103 = vector.broadcast %102 : vector<1x194xf32> to vector<16x194xf32>
    %104 = arith.mulf %101, %103 : vector<16x194xf32>
    %105 = vector.extract_strided_slice %5 {offsets = [9, 0], sizes = [1, 194], strides = [1, 1]} : vector<16x256xf32> to vector<1x194xf32>
    %106 = vector.broadcast %105 : vector<1x194xf32> to vector<16x194xf32>
    %107 = arith.addf %104, %106 : vector<16x194xf32>
    %cst_32 = arith.constant 0.000000e+00 : f32
    %108 = vector.broadcast %cst_32 : f32 to vector<16x194xf32>
    %109 = arith.maximumf %107, %108 : vector<16x194xf32>
    %cst_33 = arith.constant 0.000000e+00 : f32
    %110 = vector.broadcast %cst_33 : f32 to vector<16x1xf32>
    %111 = vector.extract_strided_slice %109 {offsets = [0, 0], sizes = [16, 193], strides = [1, 1]} : vector<16x194xf32> to vector<16x193xf32>
    %112 = tpu.concatenate %110, %111 in 1 : vector<16x1xf32>, vector<16x193xf32> -> vector<16x194xf32>
    %113 = vector.extract_strided_slice %109 {offsets = [0, 1], sizes = [16, 193], strides = [1, 1]} : vector<16x194xf32> to vector<16x193xf32>
    %114 = tpu.concatenate %113, %110 in 1 : vector<16x193xf32>, vector<16x1xf32> -> vector<16x194xf32>
    %115 = tpu.concatenate %112, %109, %114 in 0 : vector<16x194xf32>, vector<16x194xf32>, vector<16x194xf32> -> vector<48x194xf32>
    %116 = vector.extract_strided_slice %3 {offsets = [32, 0], sizes = [16, 48], strides = [1, 1]} : vector<80x48xf32> to vector<16x48xf32>
    %cst_34 = arith.constant dense<0.000000e+00> : vector<16x194xf32>
    %117 = tpu.matmul %116, %115, %cst_34 {dimension_numbers = #tpu.dot_dimension_numbers<[1], [0], [0], [1], [0, 0, 1, 1], [], []>} : vector<16x48xf32>, vector<48x194xf32>, vector<16x194xf32> -> vector<16x194xf32>
    %118 = vector.extract_strided_slice %4 {offsets = [280, 0], sizes = [16, 1], strides = [1, 1]} : vector<328x1xf32> to vector<16x1xf32>
    %119 = vector.broadcast %118 : vector<16x1xf32> to vector<16x194xf32>
    %120 = arith.addf %117, %119 : vector<16x194xf32>
    %121 = vector.extract_strided_slice %5 {offsets = [10, 0], sizes = [1, 194], strides = [1, 1]} : vector<16x256xf32> to vector<1x194xf32>
    %122 = vector.broadcast %121 : vector<1x194xf32> to vector<16x194xf32>
    %123 = arith.mulf %120, %122 : vector<16x194xf32>
    %124 = vector.extract_strided_slice %5 {offsets = [11, 0], sizes = [1, 194], strides = [1, 1]} : vector<16x256xf32> to vector<1x194xf32>
    %125 = vector.broadcast %124 : vector<1x194xf32> to vector<16x194xf32>
    %126 = arith.addf %123, %125 : vector<16x194xf32>
    %cst_35 = arith.constant 0.000000e+00 : f32
    %127 = vector.broadcast %cst_35 : f32 to vector<16x194xf32>
    %128 = arith.maximumf %126, %127 : vector<16x194xf32>
    %129 = vector.extract_strided_slice %3 {offsets = [48, 0], sizes = [32, 16], strides = [1, 1]} : vector<80x48xf32> to vector<32x16xf32>
    %cst_36 = arith.constant dense<0.000000e+00> : vector<32x194xf32>
    %130 = tpu.matmul %129, %128, %cst_36 {dimension_numbers = #tpu.dot_dimension_numbers<[1], [0], [0], [1], [0, 0, 1, 1], [], []>} : vector<32x16xf32>, vector<16x194xf32>, vector<32x194xf32> -> vector<32x194xf32>
    %131 = vector.extract_strided_slice %4 {offsets = [296, 0], sizes = [32, 1], strides = [1, 1]} : vector<328x1xf32> to vector<32x1xf32>
    %132 = vector.broadcast %131 : vector<32x1xf32> to vector<32x194xf32>
    %133 = arith.addf %130, %132 : vector<32x194xf32>
    %134 = arith.addf %133, %88 : vector<32x194xf32>
    %c0_37 = arith.constant 0 : index
    %c0_38 = arith.constant 0 : index
    %135 = vector.load %arg5[%c0_37, %c0_38] : memref<194x5xf32, #tpu.memory_space<vmem>>, vector<194x5xf32>
    %cst_39 = arith.constant dense<0.000000e+00> : vector<32x5xf32>
    %136 = tpu.matmul %134, %135, %cst_39 {dimension_numbers = #tpu.dot_dimension_numbers<[1], [0], [0], [1], [0, 0, 1, 1], [], []>} : vector<32x194xf32>, vector<194x5xf32>, vector<32x5xf32> -> vector<32x5xf32>
    %137 = vector.extract_strided_slice %5 {offsets = [12, 0], sizes = [1, 5], strides = [1, 1]} : vector<16x256xf32> to vector<1x5xf32>
    %138 = vector.broadcast %137 : vector<1x5xf32> to vector<32x5xf32>
    %139 = arith.addf %136, %138 : vector<32x5xf32>
    %c0_40 = arith.constant 0 : index
    %c0_41 = arith.constant 0 : index
    %140 = vector.load %arg8[%c0_40, %c0_41] : memref<32x5xf32, #tpu.memory_space<vmem>>, vector<32x5xf32>
    tpu.vector_store %arg8[%c0_40, %c0_41], %139 {strides = array<i32>} : memref<32x5xf32, #tpu.memory_space<vmem>>, vector<32x5xf32>,
    return
  }
}

</mosaic_0001>

<llo_original>
// kernel: transfuse_s_forward.1
$region0: #{transfuse_s_forward.1}
  #allocation0 [shape = 'u32[]', space=smem, size = 0x4, offset = 0x4, fixed_abs, tag = 'smem constant byte address 0x4 - core index']
  #allocation1 [shape = 'u32[144,128]{1,0:T(1,128)}', space=vmem, size = 0x12000, scoped, tag = 'internal scratch']
  %s0 = inlined_call_operand.vmem [shape: f32[32,64], index: 0, kind: input, shape index: {}]
  %s1 = inlined_call_operand.vmem [shape: f32[32,64], index: 1, kind: input, shape index: {}]
  %s2 = inlined_call_operand.vmem [shape: f32[184,32], index: 2, kind: input, shape index: {}]
  %s3 = inlined_call_operand.vmem [shape: f32[64,192], index: 3, kind: input, shape index: {}]
  %s4 = inlined_call_operand.vmem [shape: f32[80,48], index: 4, kind: input, shape index: {}]
  %s5 = inlined_call_operand.vmem [shape: f32[194,5], index: 5, kind: input, shape index: {}]
  %s6 = inlined_call_operand.vmem [shape: f32[328,1], index: 6, kind: input, shape index: {}]
  %s7 = inlined_call_operand.vmem [shape: f32[16,256], index: 7, kind: input, shape index: {}]
  %s8 = inlined_call_operand.vmem [shape: f32[32,5], index: 8, kind: output, shape index: {}]
  %s9 = sld [smem:[#allocation0]]
  $region42: #{transfuse_s_forward.1} parent=0
    _
  %s11 = ssub.s32 1, %s9
  %s12 = scalar_select 0, %s11, %s9
  // Predicated region
  $region2: #{transfuse_s_forward.1} parent=0 // pred_check
    _
  $region3: #{transfuse_s_forward.1} parent=0 // pred_check_branch
    %14 = sbr.rel (0) target = $region5
  $region4: #{transfuse_s_forward.1} parent=0 // pred_region
    _
  $region5: #{transfuse_s_forward.1} parent=0 // pred_fallthru
    _
  // Predicated region
  $region6: #{transfuse_s_forward.1} parent=0 // pred_check
    _
  $region7: #{transfuse_s_forward.1} parent=0 // pred_check_branch
    %16 = sbr.rel (0) target = $region9
  $region8: #{transfuse_s_forward.1} parent=0 // pred_region
    _
  $region9: #{transfuse_s_forward.1} parent=0 // pred_fallthru
    _
  // Predicated region
  $region10: #{transfuse_s_forward.1} parent=0 // pred_check
    _
  $region11: #{transfuse_s_forward.1} parent=0 // pred_check_branch
    %18 = sbr.rel (0) target = $region13
  $region12: #{transfuse_s_forward.1} parent=0 // pred_region
    _
  $region13: #{transfuse_s_forward.1} parent=0 // pred_fallthru
    _
  // Predicated region
  $region14: #{transfuse_s_forward.1} parent=0 // pred_check
    _
  $region15: #{transfuse_s_forward.1} parent=0 // pred_check_branch
    %20 = sbr.rel (0) target = $region17
  $region16: #{transfuse_s_forward.1} parent=0 // pred_region
    _
  $region17: #{transfuse_s_forward.1} parent=0 // pred_fallthru
    _
  // Predicated region
  $region18: #{transfuse_s_forward.1} parent=0 // pred_check
    _
  $region19: #{transfuse_s_forward.1} parent=0 // pred_check_branch
    %22 = sbr.rel (0) target = $region21
  $region20: #{transfuse_s_forward.1} parent=0 // pred_region
    _
  $region21: #{transfuse_s_forward.1} parent=0 // pred_fallthru
    _
  // Predicated region
  $region22: #{transfuse_s_forward.1} parent=0 // pred_check
    _
  $region23: #{transfuse_s_forward.1} parent=0 // pred_check_branch
    %24 = sbr.rel (0) target = $region25
  $region24: #{transfuse_s_forward.1} parent=0 // pred_region
    _
  $region25: #{transfuse_s_forward.1} parent=0 // pred_fallthru
    _
  // Predicated region
  $region26: #{transfuse_s_forward.1} parent=0 // pred_check
    _
  $region27: #{transfuse_s_forward.1} parent=0 // pred_check_branch
    %26 = sbr.rel (0) target = $region29
  $region28: #{transfuse_s_forward.1} parent=0 // pred_region
    _
  $region29: #{transfuse_s_forward.1} parent=0 // pred_fallthru
    _
  // Predicated region
  $region30: #{transfuse_s_forward.1} parent=0 // pred_check
    _
  $region31: #{transfuse_s_forward.1} parent=0 // pred_check_branch
    %28 = sbr.rel (0) target = $region33
  $region32: #{transfuse_s_forward.1} parent=0 // pred_region
    _
  $region33: #{transfuse_s_forward.1} parent=0 // pred_fallthru
    _
  %v29 = vld [vmem:[%s0] sm:$0xff]
  %v30 = vld [vmem:[%s0 + $0x8] sm:$0xff]
  %v31 = vld [vmem:[%s0 + $0x10] sm:$0xff]
  %v32 = vld [vmem:[%s0 + $0x18] sm:$0xff]
  %v33 = vld [vmem:[%s1] sm:$0xff]
  %v34 = vld [vmem:[%s1 + $0x8] sm:$0xff]
  %v35 = vld [vmem:[%s1 + $0x10] sm:$0xff]
  %v36 = vld [vmem:[%s1 + $0x18] sm:$0xff]
  %v37 = vld [vmem:[%s2] sm:$0xff]
  %v38 = vld [vmem:[%s2 + $0x8] sm:$0xff]
  %v39 = vld [vmem:[%s2 + $0x10] sm:$0xff]
  %v40 = vld [vmem:[%s2 + $0x18] sm:$0xff]
  %v41 = vld [vmem:[%s2 + $0x20] sm:$0xff]
  %v42 = vld [vmem:[%s2 + $0x28] sm:$0xff]
  %v43 = vld [vmem:[%s2 + $0x30] sm:$0xff]
  %v44 = vld [vmem:[%s2 + $0x38] sm:$0xff]
  %v45 = vld [vmem:[%s2 + $0x40] sm:$0xff]
  %v46 = vld [vmem:[%s2 + $0x48] sm:$0xff]
  %v47 = vld [vmem:[%s2 + $0x50] sm:$0xff]
  %v48 = vld [vmem:[%s2 + $0x58] sm:$0xff]
  %v49 = vld [vmem:[%s2 + $0x60] sm:$0xff]
  %v50 = vld [vmem:[%s2 + $0x68] sm:$0xff]
  %v51 = vld [vmem:[%s2 + $0x70] sm:$0xff]
  %v52 = vld [vmem:[%s2 + $0x78] sm:$0xff]
  %v53 = vld [vmem:[%s2 + $0x80] sm:$0xff]
  %v54 = vld [vmem:[%s2 + $0x88] sm:$0xff]
  %v55 = vld [vmem:[%s2 + $0x90] sm:$0xff]
  %v56 = vld [vmem:[%s2 + $0x98] sm:$0xff]
  %v57 = vld [vmem:[%s2 + $0xa0] sm:$0xff]
  %v58 = vld [vmem:[%s2 + $0xa8] sm:$0xff]
  %v59 = vld [vmem:[%s2 + $0xb0] sm:$0xff]
  %v60 = vld [vmem:[%s4] sm:$0xff]
  %v61 = vld [vmem:[%s4 + $0x8] sm:$0xff]
  %v62 = vld [vmem:[%s4 + $0x10] sm:$0xff]
  %v63 = vld [vmem:[%s4 + $0x18] sm:$0xff]
  %v64 = vld [vmem:[%s4 + $0x20] sm:$0xff]
  %v65 = vld [vmem:[%s4 + $0x28] sm:$0xff]
  %v66 = vld [vmem:[%s4 + $0x30] sm:$0xff]
  %v67 = vld [vmem:[%s4 + $0x38] sm:$0xff]
  %v68 = vld [vmem:[%s4 + $0x40] sm:$0xff]
  %v69 = vld [vmem:[%s4 + $0x48] sm:$0xff]
  %v70 = vld [vmem:[%s6] sm:$0xff]
  %v71 = vld [vmem:[%s6 + $0x8] sm:$0xff]
  %v72 = vld [vmem:[%s6 + $0x10] sm:$0xff]
  %v73 = vld [vmem:[%s6 + $0x18] sm:$0xff]
  %v74 = vld [vmem:[%s6 + $0x20] sm:$0xff]
  %v75 = vld [vmem:[%s6 + $0x28] sm:$0xff]
  %v76 = vld [vmem:[%s6 + $0x30] sm:$0xff]
  %v77 = vld [vmem:[%s6 + $0x38] sm:$0xff]
  %v78 = vld [vmem:[%s6 + $0x40] sm:$0xff]
  %v79 = vld [vmem:[%s6 + $0x48] sm:$0xff]
  %v80 = vld [vmem:[%s6 + $0x50] sm:$0xff]
  %v81 = vld [vmem:[%s6 + $0x58] sm:$0xff]
  %v82 = vld [vmem:[%s6 + $0x60] sm:$0xff]
  %v83 = vld [vmem:[%s6 + $0x68] sm:$0xff]
  %v84 = vld [vmem:[%s6 + $0x70] sm:$0xff]
  %v85 = vld [vmem:[%s6 + $0x78] sm:$0xff]
  %v86 = vld [vmem:[%s6 + $0x80] sm:$0xff]
  %v87 = vld [vmem:[%s6 + $0x88] sm:$0xff]
  %v88 = vld [vmem:[%s6 + $0x90] sm:$0xff]
  %v89 = vld [vmem:[%s6 + $0x98] sm:$0xff]
  %v90 = vld [vmem:[%s6 + $0xa0] sm:$0xff]
  %v91 = vld [vmem:[%s6 + $0xa8] sm:$0xff]
  %v92 = vld [vmem:[%s6 + $0xb0] sm:$0xff]
  %v93 = vld [vmem:[%s6 + $0xb8] sm:$0xff]
  %v94 = vld [vmem:[%s6 + $0xc0] sm:$0xff]
  %v95 = vld [vmem:[%s6 + $0xc8] sm:$0xff]
  %v96 = vld [vmem:[%s6 + $0xd0] sm:$0xff]
  %v97 = vld [vmem:[%s6 + $0xd8] sm:$0xff]
  %v98 = vld [vmem:[%s6 + $0xe0] sm:$0xff]
  %v99 = vld [vmem:[%s6 + $0xe8] sm:$0xff]
  %v100 = vld [vmem:[%s6 + $0xf0] sm:$0xff]
  %v101 = vld [vmem:[%s6 + $0xf8] sm:$0xff]
  %v102 = vld [vmem:[%s6 + $0x100] sm:$0xff]
  %v103 = vld [vmem:[%s6 + $0x108] sm:$0xff]
  %v104 = vld [vmem:[%s6 + $0x110] sm:$0xff]
  %v105 = vld [vmem:[%s6 + $0x118] sm:$0xff]
  %v106 = vld [vmem:[%s6 + $0x120] sm:$0xff]
  %v107 = vld [vmem:[%s6 + $0x128] sm:$0xff]
  %v108 = vld [vmem:[%s6 + $0x130] sm:$0xff]
  %v109 = vld [vmem:[%s6 + $0x138] sm:$0xff]
  %v110 = vld [vmem:[%s6 + $0x140] sm:$0xff]
  %v111 = vld [vmem:[%s7] sm:$0xff]
  %v112 = vld [vmem:[%s7 + $0x8] sm:$0xff]
  %v113 = vld [vmem:[%s7 + $0x10] sm:$0xff]
  %v114 = vld [vmem:[%s7 + $0x18] sm:$0xff]
  %116 = vset.pattern.permute.xlu0 0
  %117 = vperm.xlu0 %116, %v70
  %v118 = vpop.permute.xlu0 %117
  %121 = vset.pattern.permute.xlu0 0
  %122 = vperm.xlu0 %121, %v71
  %v123 = vpop.permute.xlu0 %122
  %126 = vset.pattern.permute.xlu0 0
  %127 = vperm.xlu0 %126, %v72
  %v128 = vpop.permute.xlu0 %127
  %131 = vset.pattern.permute.xlu0 0
  %132 = vperm.xlu0 %131, %v73
  %v133 = vpop.permute.xlu0 %132
  %136 = vset.pattern.permute.xlu0 0
  %137 = vperm.xlu0 %136, %v74
  %v138 = vpop.permute.xlu0 %137
  %141 = vset.pattern.permute.xlu0 0
  %142 = vperm.xlu0 %141, %v75
  %v143 = vpop.permute.xlu0 %142
  %146 = vset.pattern.permute.xlu0 0
  %147 = vperm.xlu0 %146, %v76
  %v148 = vpop.permute.xlu0 %147
  %151 = vset.pattern.permute.xlu0 0
  %152 = vperm.xlu0 %151, %v77
  %v153 = vpop.permute.xlu0 %152
  %vm155 = vcmask 261120
  %v157 = vsel %vm155, %v37, 0
  %v160 = vsel %vm155, %v38, 0
  %v163 = vsel %vm155, %v39, 0
  %v166 = vsel %vm155, %v40, 0
  %v169 = vsel %vm155, %v41, 0
  %v172 = vsel %vm155, %v42, 0
  %v175 = vsel %vm155, %v43, 0
  %v178 = vsel %vm155, %v44, 0
  %180 = vmatprep.subr.mxu0 0.0
  %181 = vmatpush1.msra.mxu0 0.0
  %182 = vmatprep.subr.mxu0 0.0
  %183 = vmatpush1.msra.mxu0 0.0
  %184 = vmatprep.subr.mxu0 0.0
  %185 = vmatpush1.msra.mxu0 0.0
  %186 = vmatprep.subr.mxu0 0.0
  %187 = vmatpush1.msra.mxu0 0.0
  %188 = vmatprep.subr.mxu0 0.0
  %189 = vmatpush1.msra.mxu0 0.0
  %190 = vmatprep.subr.mxu0 0.0
  %191 = vmatpush1.msra.mxu0 0.0
  %192 = vmatprep.subr.mxu0 0.0
  %193 = vmatpush1.msra.mxu0 0.0
  %194 = vmatprep.subr.mxu0 0.0
  %195 = vmatpush1.msra.mxu0 0.0
  %196 = vmatprep.subr.mxu0 0.0
  %197 = vmatpush1.msra.mxu0 0.0
  %198 = vmatprep.subr.mxu0 0.0
  %199 = vmatpush1.msra.mxu0 0.0
  %200 = vmatprep.subr.mxu0 0.0
  %201 = vmatpush1.msra.mxu0 0.0
  %202 = vmatprep.subr.mxu0 0.0
  %203 = vmatpush1.msra.mxu0 0.0
  %204 = vmatprep.subr.mxu0 0.0
  %205 = vmatpush1.msra.mxu0 %v32
  %206 = vmatprep.subr.mxu0 0.0
  %207 = vmatpush1.msra.mxu0 %v31
  %208 = vmatprep.subr.mxu0 0.0
  %209 = vmatpush1.msra.mxu0 %v30
  %210 = vmatprep.subr.mxu0 0.0
  %211 = vmatpush1.msra.mxu0 %v29
  %212 = vmatprep.subr.mxu0 0.0
  %213 = vmatpush2.msra.mxu0 0.0
  %214 = vmatprep.subr.mxu0 0.0
  %215 = vmatpush2.msra.mxu0 0.0
  %216 = vmatprep.subr.mxu0 0.0
  %217 = vmatpush2.msra.mxu0 0.0
  %218 = vmatprep.subr.mxu0 0.0
  %219 = vmatpush2.msra.mxu0 0.0
  %220 = vmatprep.subr.mxu0 0.0
  %221 = vmatpush2.msra.mxu0 0.0
  %222 = vmatprep.subr.mxu0 0.0
  %223 = vmatpush2.msra.mxu0 0.0
  %224 = vmatprep.subr.mxu0 0.0
  %225 = vmatpush2.msra.mxu0 0.0
  %226 = vmatprep.subr.mxu0 0.0
  %227 = vmatpush2.msra.mxu0 0.0
  %228 = vmatprep.subr.mxu0 0.0
  %229 = vmatpush2.msra.mxu0 0.0
  %230 = vmatprep.subr.mxu0 0.0
  %231 = vmatpush2.msra.mxu0 0.0
  %232 = vmatprep.subr.mxu0 0.0
  %233 = vmatpush2.msra.mxu0 0.0
  %234 = vmatprep.subr.mxu0 0.0
  %235 = vmatpush2.msra.mxu0 0.0
  %236 = vmatprep.subr.mxu0 0.0
  %237 = vmatpush2.msra.mxu0 0.0
  %238 = vmatprep.subr.mxu0 0.0
  %239 = vmatpush2.msra.mxu0 0.0
  %240 = vmatprep.subr.mxu0 0.0
  %241 = vmatpush2.msra.mxu0 0.0
  %242 = vmatprep.subr.mxu0 0.0
  %243 = vmatpush2.msra.mxu0 0.0
  %244 = vmatprep.mubr.f32.mxu0 0.0
  %245 = vmatmul.mubr.f32.gmra.mxu0 %v157
  %v246 = vpop.f32.mrf.mxu0
  %v247 = vadd.f32 %v118, %v246
  %v248 = vpop.f32.mrf.mxu0
  %249 = vmatprep.mubr.f32.mxu0 0.0
  %250 = vmatmul.mubr.f32.gmra.mxu0 %v160
  %v251 = vpop.f32.mrf.mxu0
  %v252 = vadd.f32 %v123, %v251
  %v253 = vpop.f32.mrf.mxu0
  %254 = vmatprep.mubr.f32.mxu0 0.0
  %255 = vmatmul.mubr.f32.gmra.mxu0 %v163
  %v256 = vpop.f32.mrf.mxu0
  %v257 = vadd.f32 %v128, %v256
  %v258 = vpop.f32.mrf.mxu0
  %259 = vmatprep.mubr.f32.mxu0 0.0
  %260 = vmatmul.mubr.f32.gmra.mxu0 %v166
  %v261 = vpop.f32.mrf.mxu0
  %v262 = vadd.f32 %v133, %v261
  %v263 = vpop.f32.mrf.mxu0
  %264 = vmatprep.mubr.f32.mxu0 0.0
  %265 = vmatmul.mubr.f32.gmra.mxu0 %v169
  %v266 = vpop.f32.mrf.mxu0
  %v267 = vadd.f32 %v138, %v266
  %v268 = vpop.f32.mrf.mxu0
  %269 = vmatprep.mubr.f32.mxu0 0.0
  %270 = vmatmul.mubr.f32.gmra.mxu0 %v172
  %v271 = vpop.f32.mrf.mxu0
  %v272 = vadd.f32 %v143, %v271
  %v273 = vpop.f32.mrf.mxu0
  %274 = vmatprep.mubr.f32.mxu0 0.0
  %275 = vmatmul.mubr.f32.gmra.mxu0 %v175
  %v276 = vpop.f32.mrf.mxu0
  %v277 = vadd.f32 %v148, %v276
  %v278 = vpop.f32.mrf.mxu0
  %279 = vmatprep.mubr.f32.mxu0 0.0
  %280 = vmatmul.mubr.f32.gmra.mxu0 %v178
  %v281 = vpop.f32.mrf.mxu0
  %v282 = vadd.f32 %v153, %v281
  %v283 = vpop.f32.mrf.mxu0
  %284 = vdwg.mxu0
  %v285 = vlaneseq
  %v286 = vshrl.u32 %v285, 7
  %v287 = vsub.s32 0, %v286
  %v288 = vrot.slane %v111, %v287
  %v289 = vmul.f32 %v247, %v288
  %v290 = vmul.f32 %v252, %v288
  %v291 = vmul.f32 %v257, %v288
  %v292 = vmul.f32 %v262, %v288
  %v293 = vmul.f32 %v267, %v288
  %v294 = vmul.f32 %v272, %v288
  %v295 = vmul.f32 %v277, %v288
  %v296 = vmul.f32 %v282, %v288
  %v297 = vlaneseq
  %v298 = vshrl.u32 %v297, 7
  %v299 = vsub.s32 1, %v298
  %v300 = vrot.slane %v111, %v299
  %v301 = vadd.f32 %v289, %v300
  %v302 = vadd.f32 %v290, %v300
  %v303 = vadd.f32 %v291, %v300
  %v304 = vadd.f32 %v292, %v300
  %v305 = vadd.f32 %v293, %v300
  %v306 = vadd.f32 %v294, %v300
  %v307 = vadd.f32 %v295, %v300
  %v308 = vadd.f32 %v296, %v300
  %310 = vset.pattern.permute.xlu0 0
  %311 = vperm.xlu0 %310, %v78
  %v312 = vpop.permute.xlu0 %311
  %315 = vset.pattern.permute.xlu0 0
  %316 = vperm.xlu0 %315, %v79
  %v317 = vpop.permute.xlu0 %316
  %320 = vset.pattern.permute.xlu0 0
  %321 = vperm.xlu0 %320, %v80
  %v322 = vpop.permute.xlu0 %321
  %325 = vset.pattern.permute.xlu0 0
  %326 = vperm.xlu0 %325, %v81
  %v327 = vpop.permute.xlu0 %326
  %330 = vset.pattern.permute.xlu0 0
  %331 = vperm.xlu0 %330, %v82
  %v332 = vpop.permute.xlu0 %331
  %335 = vset.pattern.permute.xlu0 0
  %336 = vperm.xlu0 %335, %v83
  %v337 = vpop.permute.xlu0 %336
  %340 = vset.pattern.permute.xlu0 0
  %341 = vperm.xlu0 %340, %v84
  %v342 = vpop.permute.xlu0 %341
  %345 = vset.pattern.permute.xlu0 0
  %346 = vperm.xlu0 %345, %v85
  %v347 = vpop.permute.xlu0 %346
  %v350 = vsel %vm155, %v45, 0
  %v353 = vsel %vm155, %v46, 0
  %v356 = vsel %vm155, %v47, 0
  %v359 = vsel %vm155, %v48, 0
  %v362 = vsel %vm155, %v49, 0
  %v365 = vsel %vm155, %v50, 0
  %v368 = vsel %vm155, %v51, 0
  %v371 = vsel %vm155, %v52, 0
  %373 = vmatprep.subr.mxu0 0.0
  %374 = vmatpush1.msra.mxu0 0.0
  %375 = vmatprep.subr.mxu0 0.0
  %376 = vmatpush1.msra.mxu0 0.0
  %377 = vmatprep.subr.mxu0 0.0
  %378 = vmatpush1.msra.mxu0 0.0
  %379 = vmatprep.subr.mxu0 0.0
  %380 = vmatpush1.msra.mxu0 0.0
  %381 = vmatprep.subr.mxu0 0.0
  %382 = vmatpush1.msra.mxu0 0.0
  %383 = vmatprep.subr.mxu0 0.0
  %384 = vmatpush1.msra.mxu0 0.0
  %385 = vmatprep.subr.mxu0 0.0
  %386 = vmatpush1.msra.mxu0 0.0
  %387 = vmatprep.subr.mxu0 0.0
  %388 = vmatpush1.msra.mxu0 0.0
  %389 = vmatprep.subr.mxu0 0.0
  %390 = vmatpush1.msra.mxu0 0.0
  %391 = vmatprep.subr.mxu0 0.0
  %392 = vmatpush1.msra.mxu0 0.0
  %393 = vmatprep.subr.mxu0 0.0
  %394 = vmatpush1.msra.mxu0 0.0
  %395 = vmatprep.subr.mxu0 0.0
  %396 = vmatpush1.msra.mxu0 0.0
  %397 = vmatprep.subr.mxu0 0.0
  %398 = vmatpush1.msra.mxu0 %v36
  %399 = vmatprep.subr.mxu0 0.0
  %400 = vmatpush1.msra.mxu0 %v35
  %401 = vmatprep.subr.mxu0 0.0
  %402 = vmatpush1.msra.mxu0 %v34
  %403 = vmatprep.subr.mxu0 0.0
  %404 = vmatpush1.msra.mxu0 %v33
  %405 = vmatprep.subr.mxu0 0.0
  %406 = vmatpush2.msra.mxu0 0.0
  %407 = vmatprep.subr.mxu0 0.0
  %408 = vmatpush2.msra.mxu0 0.0
  %409 = vmatprep.subr.mxu0 0.0
  %410 = vmatpush2.msra.mxu0 0.0
  %411 = vmatprep.subr.mxu0 0.0
  %412 = vmatpush2.msra.mxu0 0.0
  %413 = vmatprep.subr.mxu0 0.0
  %414 = vmatpush2.msra.mxu0 0.0
  %415 = vmatprep.subr.mxu0 0.0
  %416 = vmatpush2.msra.mxu0 0.0
  %417 = vmatprep.subr.mxu0 0.0
  %418 = vmatpush2.msra.mxu0 0.0
  %419 = vmatprep.subr.mxu0 0.0
  %420 = vmatpush2.msra.mxu0 0.0
  %421 = vmatprep.subr.mxu0 0.0
  %422 = vmatpush2.msra.mxu0 0.0
  %423 = vmatprep.subr.mxu0 0.0
  %424 = vmatpush2.msra.mxu0 0.0
  %425 = vmatprep.subr.mxu0 0.0
  %426 = vmatpush2.msra.mxu0 0.0
  %427 = vmatprep.subr.mxu0 0.0
  %428 = vmatpush2.msra.mxu0 0.0
  %429 = vmatprep.subr.mxu0 0.0
  %430 = vmatpush2.msra.mxu0 0.0
  %431 = vmatprep.subr.mxu0 0.0
  %432 = vmatpush2.msra.mxu0 0.0
  %433 = vmatprep.subr.mxu0 0.0
  %434 = vmatpush2.msra.mxu0 0.0
  %435 = vmatprep.subr.mxu0 0.0
  %436 = vmatpush2.msra.mxu0 0.0
  %437 = vmatprep.mubr.f32.mxu0 0.0
  %438 = vmatmul.mubr.f32.gmra.mxu0 %v350
  %v439 = vpop.f32.mrf.mxu0
  %v440 = vadd.f32 %v312, %v439
  %v441 = vpop.f32.mrf.mxu0
  %442 = vmatprep.mubr.f32.mxu0 0.0
  %443 = vmatmul.mubr.f32.gmra.mxu0 %v353
  %v444 = vpop.f32.mrf.mxu0
  %v445 = vadd.f32 %v317, %v444
  %v446 = vpop.f32.mrf.mxu0
  %447 = vmatprep.mubr.f32.mxu0 0.0
  %448 = vmatmul.mubr.f32.gmra.mxu0 %v356
  %v449 = vpop.f32.mrf.mxu0
  %v450 = vadd.f32 %v322, %v449
  %v451 = vpop.f32.mrf.mxu0
  %452 = vmatprep.mubr.f32.mxu0 0.0
  %453 = vmatmul.mubr.f32.gmra.mxu0 %v359
  %v454 = vpop.f32.mrf.mxu0
  %v455 = vadd.f32 %v327, %v454
  %v456 = vpop.f32.mrf.mxu0
  %457 = vmatprep.mubr.f32.mxu0 0.0
  %458 = vmatmul.mubr.f32.gmra.mxu0 %v362
  %v459 = vpop.f32.mrf.mxu0
  %v460 = vadd.f32 %v332, %v459
  %v461 = vpop.f32.mrf.mxu0
  %462 = vmatprep.mubr.f32.mxu0 0.0
  %463 = vmatmul.mubr.f32.gmra.mxu0 %v365
  %v464 = vpop.f32.mrf.mxu0
  %v465 = vadd.f32 %v337, %v464
  %v466 = vpop.f32.mrf.mxu0
  %467 = vmatprep.mubr.f32.mxu0 0.0
  %468 = vmatmul.mubr.f32.gmra.mxu0 %v368
  %v469 = vpop.f32.mrf.mxu0
  %v470 = vadd.f32 %v342, %v469
  %v471 = vpop.f32.mrf.mxu0
  %472 = vmatprep.mubr.f32.mxu0 0.0
  %473 = vmatmul.mubr.f32.gmra.mxu0 %v371
  %v474 = vpop.f32.mrf.mxu0
  %v475 = vadd.f32 %v347, %v474
  %v476 = vpop.f32.mrf.mxu0
  %477 = vdwg.mxu0
  %v478 = vlaneseq
  %v479 = vshrl.u32 %v478, 7
  %v480 = vsub.s32 2, %v479
  %v481 = vrot.slane %v111, %v480
  %v482 = vmul.f32 %v440, %v481
  %v483 = vmul.f32 %v445, %v481
  %v484 = vmul.f32 %v450, %v481
  %v485 = vmul.f32 %v455, %v481
  %v486 = vmul.f32 %v460, %v481
  %v487 = vmul.f32 %v465, %v481
  %v488 = vmul.f32 %v470, %v481
  %v489 = vmul.f32 %v475, %v481
  %v490 = vlaneseq
  %v491 = vshrl.u32 %v490, 7
  %v492 = vsub.s32 3, %v491
  %v493 = vrot.slane %v111, %v492
  %v494 = vadd.f32 %v482, %v493
  %v495 = vadd.f32 %v483, %v493
  %v496 = vadd.f32 %v484, %v493
  %v497 = vadd.f32 %v485, %v493
  %v498 = vadd.f32 %v486, %v493
  %v499 = vadd.f32 %v487, %v493
  %v500 = vadd.f32 %v488, %v493
  %v501 = vadd.f32 %v489, %v493
  %v502 = vmul.f32 %v301, %v494
  %v503 = vmul.f32 %v302, %v495
  %v504 = vmul.f32 %v303, %v496
  %v505 = vmul.f32 %v304, %v497
  %v506 = vmul.f32 %v305, %v498
  %v507 = vmul.f32 %v306, %v499
  %v508 = vmul.f32 %v307, %v500
  %v509 = vmul.f32 %v308, %v501
  %518 = vrot.lane.b32.xlu0 %v502, 1
  %v519 = vpop.permute.xlu0 %518
  %520 = vrot.lane.b32.xlu0 %v503, 1
  %v521 = vpop.permute.xlu0 %520
  %522 = vrot.lane.b32.xlu0 %v504, 1
  %v523 = vpop.permute.xlu0 %522
  %524 = vrot.lane.b32.xlu0 %v505, 1
  %v525 = vpop.permute.xlu0 %524
  %526 = vrot.lane.b32.xlu0 %v506, 1
  %v527 = vpop.permute.xlu0 %526
  %528 = vrot.lane.b32.xlu0 %v507, 1
  %v529 = vpop.permute.xlu0 %528
  %530 = vrot.lane.b32.xlu0 %v508, 1
  %v531 = vpop.permute.xlu0 %530
  %532 = vrot.lane.b32.xlu0 %v509, 1
  %v533 = vpop.permute.xlu0 %532
  %vm542 = vcmask 7168
  %v543 = vsel %vm542, 0.0, %v519
  %v544 = vsel %vm542, 0.0, %v521
  %v545 = vsel %vm542, 0.0, %v523
  %v546 = vsel %vm542, 0.0, %v525
  %v547 = vsel %vm542, 0.0, %v527
  %v548 = vsel %vm542, 0.0, %v529
  %v549 = vsel %vm542, 0.0, %v531
  %v550 = vsel %vm542, 0.0, %v533
  %551 = vrot.lane.b32.xlu0 %v502, 127
  %v552 = vpop.permute.xlu0 %551
  %553 = vrot.lane.b32.xlu0 %v503, 127
  %v554 = vpop.permute.xlu0 %553
  %555 = vrot.lane.b32.xlu0 %v504, 127
  %v556 = vpop.permute.xlu0 %555
  %557 = vrot.lane.b32.xlu0 %v505, 127
  %v558 = vpop.permute.xlu0 %557
  %559 = vrot.lane.b32.xlu0 %v506, 127
  %v560 = vpop.permute.xlu0 %559
  %561 = vrot.lane.b32.xlu0 %v507, 127
  %v562 = vpop.permute.xlu0 %561
  %563 = vrot.lane.b32.xlu0 %v508, 127
  %v564 = vpop.permute.xlu0 %563
  %565 = vrot.lane.b32.xlu0 %v509, 127
  %v566 = vpop.permute.xlu0 %565
  %vm575 = vcmask 515072
  %v576 = vsel %vm575, %v552, 0.0
  %v577 = vsel %vm575, %v554, 0.0
  %v578 = vsel %vm575, %v556, 0.0
  %v579 = vsel %vm575, %v558, 0.0
  %v580 = vsel %vm575, %v560, 0.0
  %v581 = vsel %vm575, %v562, 0.0
  %v582 = vsel %vm575, %v564, 0.0
  %v583 = vsel %vm575, %v566, 0.0
  %v584 = vld [vmem:[%s3] sm:$0xff]
  %v585 = vld [vmem:[%s3 + $0x8] sm:$0xff]
  %v586 = vld [vmem:[%s3 + $0x10] sm:$0xff]
  %v587 = vld [vmem:[%s3 + $0x18] sm:$0xff]
  %v588 = vld [vmem:[%s3 + $0x20] sm:$0xff]
  %v589 = vld [vmem:[%s3 + $0x28] sm:$0xff]
  %v590 = vld [vmem:[%s3 + $0x30] sm:$0xff]
  %v591 = vld [vmem:[%s3 + $0x38] sm:$0xff]
  %v592 = vld [vmem:[%s3 + $0x40] sm:$0xff]
  %v593 = vld [vmem:[%s3 + $0x48] sm:$0xff]
  %v594 = vld [vmem:[%s3 + $0x50] sm:$0xff]
  %v595 = vld [vmem:[%s3 + $0x58] sm:$0xff]
  %v596 = vld [vmem:[%s3 + $0x60] sm:$0xff]
  %v597 = vld [vmem:[%s3 + $0x68] sm:$0xff]
  %v598 = vld [vmem:[%s3 + $0x70] sm:$0xff]
  %v599 = vld [vmem:[%s3 + $0x78] sm:$0xff]
  %601 = vset.pattern.permute.xlu0 0
  %602 = vperm.xlu0 %601, %v86
  %v603 = vpop.permute.xlu0 %602
  %606 = vset.pattern.permute.xlu0 0
  %607 = vperm.xlu0 %606, %v87
  %v608 = vpop.permute.xlu0 %607
  %611 = vset.pattern.permute.xlu0 0
  %612 = vperm.xlu0 %611, %v88
  %v613 = vpop.permute.xlu0 %612
  %616 = vset.pattern.permute.xlu0 0
  %617 = vperm.xlu0 %616, %v89
  %v618 = vpop.permute.xlu0 %617
  %621 = vset.pattern.permute.xlu0 0
  %622 = vperm.xlu0 %621, %v90
  %v623 = vpop.permute.xlu0 %622
  %626 = vset.pattern.permute.xlu0 0
  %627 = vperm.xlu0 %626, %v91
  %v628 = vpop.permute.xlu0 %627
  %631 = vset.pattern.permute.xlu0 0
  %632 = vperm.xlu0 %631, %v92
  %v633 = vpop.permute.xlu0 %632
  %636 = vset.pattern.permute.xlu0 0
  %637 = vperm.xlu0 %636, %v93
  %v638 = vpop.permute.xlu0 %637
  %vm640 = vcmask 523264
  %v642 = vsel %vm640, %v585, 0
  %v645 = vsel %vm640, %v587, 0
  %v648 = vsel %vm640, %v589, 0
  %v651 = vsel %vm640, %v591, 0
  %v654 = vsel %vm640, %v593, 0
  %v657 = vsel %vm640, %v595, 0
  %v660 = vsel %vm640, %v597, 0
  %v663 = vsel %vm640, %v599, 0
  %665 = vmatprep.subr.mxu0 0.0
  %666 = vmatpush1.msra.mxu0 %v509
  %667 = vmatprep.subr.mxu0 0.0
  %668 = vmatpush1.msra.mxu0 %v508
  %669 = vmatprep.subr.mxu0 0.0
  %670 = vmatpush1.msra.mxu0 %v507
  %671 = vmatprep.subr.mxu0 0.0
  %672 = vmatpush1.msra.mxu0 %v506
  %673 = vmatprep.subr.mxu0 0.0
  %674 = vmatpush1.msra.mxu0 %v505
  %675 = vmatprep.subr.mxu0 0.0
  %676 = vmatpush1.msra.mxu0 %v504
  %677 = vmatprep.subr.mxu0 0.0
  %678 = vmatpush1.msra.mxu0 %v503
  %679 = vmatprep.subr.mxu0 0.0
  %680 = vmatpush1.msra.mxu0 %v502
  %681 = vmatprep.subr.mxu0 0.0
  %682 = vmatpush1.msra.mxu0 %v550
  %683 = vmatprep.subr.mxu0 0.0
  %684 = vmatpush1.msra.mxu0 %v549
  %685 = vmatprep.subr.mxu0 0.0
  %686 = vmatpush1.msra.mxu0 %v548
  %687 = vmatprep.subr.mxu0 0.0
  %688 = vmatpush1.msra.mxu0 %v547
  %689 = vmatprep.subr.mxu0 0.0
  %690 = vmatpush1.msra.mxu0 %v546
  %691 = vmatprep.subr.mxu0 0.0
  %692 = vmatpush1.msra.mxu0 %v545
  %693 = vmatprep.subr.mxu0 0.0
  %694 = vmatpush1.msra.mxu0 %v544
  %695 = vmatprep.subr.mxu0 0.0
  %696 = vmatpush1.msra.mxu0 %v543
  %697 = vmatprep.subr.mxu0 0.0
  %698 = vmatpush2.msra.mxu0 0.0
  %699 = vmatprep.subr.mxu0 0.0
  %700 = vmatpush2.msra.mxu0 0.0
  %701 = vmatprep.subr.mxu0 0.0
  %702 = vmatpush2.msra.mxu0 0.0
  %703 = vmatprep.subr.mxu0 0.0
  %704 = vmatpush2.msra.mxu0 0.0
  %705 = vmatprep.subr.mxu0 0.0
  %706 = vmatpush2.msra.mxu0 0.0
  %707 = vmatprep.subr.mxu0 0.0
  %708 = vmatpush2.msra.mxu0 0.0
  %709 = vmatprep.subr.mxu0 0.0
  %710 = vmatpush2.msra.mxu0 0.0
  %711 = vmatprep.subr.mxu0 0.0
  %712 = vmatpush2.msra.mxu0 0.0
  %713 = vmatprep.subr.mxu0 0.0
  %714 = vmatpush2.msra.mxu0 %v583
  %715 = vmatprep.subr.mxu0 0.0
  %716 = vmatpush2.msra.mxu0 %v582
  %717 = vmatprep.subr.mxu0 0.0
  %718 = vmatpush2.msra.mxu0 %v581
  %719 = vmatprep.subr.mxu0 0.0
  %720 = vmatpush2.msra.mxu0 %v580
  %721 = vmatprep.subr.mxu0 0.0
  %722 = vmatpush2.msra.mxu0 %v579
  %723 = vmatprep.subr.mxu0 0.0
  %724 = vmatpush2.msra.mxu0 %v578
  %725 = vmatprep.subr.mxu0 0.0
  %726 = vmatpush2.msra.mxu0 %v577
  %727 = vmatprep.subr.mxu0 0.0
  %728 = vmatpush2.msra.mxu0 %v576
  %729 = vmatprep.mubr.f32.mxu0 %v642
  %730 = vmatmul.mubr.f32.gmra.mxu0 %v584
  %v731 = vpop.f32.mrf.mxu0
  %v732 = vadd.f32 %v603, %v731
  %v733 = vpop.f32.mrf.mxu0
  %734 = vmatprep.mubr.f32.mxu0 %v645
  %735 = vmatmul.mubr.f32.gmra.mxu0 %v586
  %v736 = vpop.f32.mrf.mxu0
  %v737 = vadd.f32 %v608, %v736
  %v738 = vpop.f32.mrf.mxu0
  %739 = vmatprep.mubr.f32.mxu0 %v648
  %740 = vmatmul.mubr.f32.gmra.mxu0 %v588
  %v741 = vpop.f32.mrf.mxu0
  %v742 = vadd.f32 %v613, %v741
  %v743 = vpop.f32.mrf.mxu0
  %744 = vmatprep.mubr.f32.mxu0 %v651
  %745 = vmatmul.mubr.f32.gmra.mxu0 %v590
  %v746 = vpop.f32.mrf.mxu0
  %v747 = vadd.f32 %v618, %v746
  %v748 = vpop.f32.mrf.mxu0
  %749 = vmatprep.mubr.f32.mxu0 %v654
  %750 = vmatmul.mubr.f32.gmra.mxu0 %v592
  %v751 = vpop.f32.mrf.mxu0
  %v752 = vadd.f32 %v623, %v751
  %v753 = vpop.f32.mrf.mxu0
  %754 = vmatprep.mubr.f32.mxu0 %v657
  %755 = vmatmul.mubr.f32.gmra.mxu0 %v594
  %v756 = vpop.f32.mrf.mxu0
  %v757 = vadd.f32 %v628, %v756
  %v758 = vpop.f32.mrf.mxu0
  %759 = vmatprep.mubr.f32.mxu0 %v660
  %760 = vmatmul.mubr.f32.gmra.mxu0 %v596
  %v761 = vpop.f32.mrf.mxu0
  %v762 = vadd.f32 %v633, %v761
  %v763 = vpop.f32.mrf.mxu0
  %764 = vmatprep.mubr.f32.mxu0 %v663
  %765 = vmatmul.mubr.f32.gmra.mxu0 %v598
  %v766 = vpop.f32.mrf.mxu0
  %v767 = vadd.f32 %v638, %v766
  %v768 = vpop.f32.mrf.mxu0
  %769 = vdwg.mxu0
  %v770 = vlaneseq
  %v771 = vshrl.u32 %v770, 7
  %v772 = vsub.s32 4, %v771
  %v773 = vrot.slane %v111, %v772
  %v774 = vmul.f32 %v732, %v773
  %v775 = vmul.f32 %v737, %v773
  %v776 = vmul.f32 %v742, %v773
  %v777 = vmul.f32 %v747, %v773
  %v778 = vmul.f32 %v752, %v773
  %v779 = vmul.f32 %v757, %v773
  %v780 = vmul.f32 %v762, %v773
  %v781 = vmul.f32 %v767, %v773
  %v782 = vlaneseq
  %v783 = vshrl.u32 %v782, 7
  %v784 = vsub.s32 5, %v783
  %v785 = vrot.slane %v111, %v784
  %v786 = vadd.f32 %v774, %v785
  %v787 = vadd.f32 %v775, %v785
  %v788 = vadd.f32 %v776, %v785
  %v789 = vadd.f32 %v777, %v785
  %v790 = vadd.f32 %v778, %v785
  %v791 = vadd.f32 %v779, %v785
  %v792 = vadd.f32 %v780, %v785
  %v793 = vadd.f32 %v781, %v785
  %v794 = vmax.f32 %v786, 0.0
  %v795 = vmax.f32 %v787, 0.0
  %v796 = vmax.f32 %v788, 0.0
  %v797 = vmax.f32 %v789, 0.0
  %v798 = vmax.f32 %v790, 0.0
  %v799 = vmax.f32 %v791, 0.0
  %v800 = vmax.f32 %v792, 0.0
  %v801 = vmax.f32 %v793, 0.0
  %v802 = vsel %vm640, %v29, -inf
  %803 = vmax.xlane.f32.xlu0 %v802
  %v804 = vpop.xlane.xlu0 %803
  %v805 = vsel %vm640, %v30, -inf
  %806 = vmax.xlane.f32.xlu0 %v805
  %v807 = vpop.xlane.xlu0 %806
  %v808 = vsel %vm640, %v31, -inf
  %809 = vmax.xlane.f32.xlu0 %v808
  %v810 = vpop.xlane.xlu0 %809
  %v811 = vsel %vm640, %v32, -inf
  %812 = vmax.xlane.f32.xlu0 %v811
  %v813 = vpop.xlane.xlu0 %812
  %v814 = vsel %vm640, %v29, 0.0
  %815 = vadd.xlane.f32.xlu0 %v814
  %v816 = vpop.xlane.xlu0 %815
  %v817 = vsel %vm640, %v30, 0.0
  %818 = vadd.xlane.f32.xlu0 %v817
  %v819 = vpop.xlane.xlu0 %818
  %v820 = vsel %vm640, %v31, 0.0
  %821 = vadd.xlane.f32.xlu0 %v820
  %v822 = vpop.xlane.xlu0 %821
  %v823 = vsel %vm640, %v32, 0.0
  %824 = vadd.xlane.f32.xlu0 %v823
  %v825 = vpop.xlane.xlu0 %824
  %v826 = vrcp.pop 64.0
  %v827 = vmul.f32 %v816, %v826
  %v828 = vmul.f32 %v819, %v826
  %v829 = vmul.f32 %v822, %v826
  %v830 = vmul.f32 %v825, %v826
  %v831 = vsel %vm542, %v804, %v827
  %v832 = vsel %vm542, %v807, %v828
  %v833 = vsel %vm542, %v810, %v829
  %v834 = vsel %vm542, %v813, %v830
  %v835 = vsub.f32 0.0, %v831
  %v836 = vsub.f32 0.0, %v832
  %v837 = vsub.f32 0.0, %v833
  %v838 = vsub.f32 0.0, %v834
  %v839 = vmul.f32 %v835, 1.442695
  %v840 = vpow.pop %v839
  %v841 = vmul.f32 %v836, 1.442695
  %v842 = vpow.pop %v841
  %v843 = vmul.f32 %v837, 1.442695
  %v844 = vpow.pop %v843
  %v845 = vmul.f32 %v838, 1.442695
  %v846 = vpow.pop %v845
  %v847 = vadd.f32 %v840, 1.0
  %v848 = vadd.f32 %v842, 1.0
  %v849 = vadd.f32 %v844, 1.0
  %v850 = vadd.f32 %v846, 1.0
  %v851 = vrcp.pop %v847
  %v852 = vmul.f32 1.0, %v851
  %v853 = vrcp.pop %v848
  %v854 = vmul.f32 1.0, %v853
  %v855 = vrcp.pop %v849
  %v856 = vmul.f32 1.0, %v855
  %v857 = vrcp.pop %v850
  %v858 = vmul.f32 1.0, %v857
  %860 = vset.pattern.permute.xlu0 0
  %861 = vperm.xlu0 %860, %v94
  %v862 = vpop.permute.xlu0 %861
  %v865 = vsel %vm155, %v53, 0
  %867 = vmatprep.subr.mxu0 0.0
  %868 = vmatpush1.msra.mxu0 0.0
  %869 = vmatprep.subr.mxu0 0.0
  %870 = vmatpush1.msra.mxu0 0.0
  %871 = vmatprep.subr.mxu0 0.0
  %872 = vmatpush1.msra.mxu0 0.0
  %873 = vmatprep.subr.mxu0 0.0
  %874 = vmatpush1.msra.mxu0 0.0
  %875 = vmatprep.subr.mxu0 0.0
  %876 = vmatpush1.msra.mxu0 0.0
  %877 = vmatprep.subr.mxu0 0.0
  %878 = vmatpush1.msra.mxu0 0.0
  %879 = vmatprep.subr.mxu0 0.0
  %880 = vmatpush1.msra.mxu0 0.0
  %881 = vmatprep.subr.mxu0 0.0
  %882 = vmatpush1.msra.mxu0 0.0
  %883 = vmatprep.subr.mxu0 0.0
  %884 = vmatpush1.msra.mxu0 0.0
  %885 = vmatprep.subr.mxu0 0.0
  %886 = vmatpush1.msra.mxu0 0.0
  %887 = vmatprep.subr.mxu0 0.0
  %888 = vmatpush1.msra.mxu0 0.0
  %889 = vmatprep.subr.mxu0 0.0
  %890 = vmatpush1.msra.mxu0 0.0
  %891 = vmatprep.subr.mxu0 0.0
  %892 = vmatpush1.msra.mxu0 %v36
  %893 = vmatprep.subr.mxu0 0.0
  %894 = vmatpush1.msra.mxu0 %v35
  %895 = vmatprep.subr.mxu0 0.0
  %896 = vmatpush1.msra.mxu0 %v34
  %897 = vmatprep.subr.mxu0 0.0
  %898 = vmatpush1.msra.mxu0 %v33
  %899 = vmatprep.subr.mxu0 0.0
  %900 = vmatpush2.msra.mxu0 0.0
  %901 = vmatprep.subr.mxu0 0.0
  %902 = vmatpush2.msra.mxu0 0.0
  %903 = vmatprep.subr.mxu0 0.0
  %904 = vmatpush2.msra.mxu0 0.0
  %905 = vmatprep.subr.mxu0 0.0
  %906 = vmatpush2.msra.mxu0 0.0
  %907 = vmatprep.subr.mxu0 0.0
  %908 = vmatpush2.msra.mxu0 0.0
  %909 = vmatprep.subr.mxu0 0.0
  %910 = vmatpush2.msra.mxu0 0.0
  %911 = vmatprep.subr.mxu0 0.0
  %912 = vmatpush2.msra.mxu0 0.0
  %913 = vmatprep.subr.mxu0 0.0
  %914 = vmatpush2.msra.mxu0 0.0
  %915 = vmatprep.subr.mxu0 0.0
  %916 = vmatpush2.msra.mxu0 0.0
  %917 = vmatprep.subr.mxu0 0.0
  %918 = vmatpush2.msra.mxu0 0.0
  %919 = vmatprep.subr.mxu0 0.0
  %920 = vmatpush2.msra.mxu0 0.0
  %921 = vmatprep.subr.mxu0 0.0
  %922 = vmatpush2.msra.mxu0 0.0
  %923 = vmatprep.subr.mxu0 0.0
  %924 = vmatpush2.msra.mxu0 0.0
  %925 = vmatprep.subr.mxu0 0.0
  %926 = vmatpush2.msra.mxu0 0.0
  %927 = vmatprep.subr.mxu0 0.0
  %928 = vmatpush2.msra.mxu0 0.0
  %929 = vmatprep.subr.mxu0 0.0
  %930 = vmatpush2.msra.mxu0 0.0
  %931 = vmatprep.mubr.f32.mxu0 0.0
  %932 = vmatmul.mubr.f32.gmra.mxu0 %v865
  %v933 = vpop.f32.mrf.mxu0
  %v934 = vadd.f32 %v862, %v933
  %v935 = vpop.f32.mrf.mxu0
  %936 = vdwg.mxu0
  %v937 = vmax.f32 %v934, 0.0
  %939 = vset.pattern.permute.xlu0 0
  %940 = vperm.xlu0 %939, %v95
  %v941 = vpop.permute.xlu0 %940
  %944 = vset.pattern.permute.xlu0 0
  %945 = vperm.xlu0 %944, %v96
  %v946 = vpop.permute.xlu0 %945
  %949 = vset.pattern.permute.xlu0 0
  %950 = vperm.xlu0 %949, %v97
  %v951 = vpop.permute.xlu0 %950
  %954 = vset.pattern.permute.xlu0 0
  %955 = vperm.xlu0 %954, %v98
  %v956 = vpop.permute.xlu0 %955
  %vm958 = vcmask 64512
  %v960 = vsel %vm958, %v60, 0
  %v963 = vsel %vm958, %v61, 0
  %v966 = vsel %vm958, %v62, 0
  %v969 = vsel %vm958, %v63, 0
  %971 = vmatprep.subr.mxu0 0.0
  %972 = vmatpush1.msra.mxu0 0.0
  %973 = vmatprep.subr.mxu0 0.0
  %974 = vmatpush1.msra.mxu0 0.0
  %975 = vmatprep.subr.mxu0 0.0
  %976 = vmatpush1.msra.mxu0 0.0
  %977 = vmatprep.subr.mxu0 0.0
  %978 = vmatpush1.msra.mxu0 0.0
  %979 = vmatprep.subr.mxu0 0.0
  %980 = vmatpush1.msra.mxu0 0.0
  %981 = vmatprep.subr.mxu0 0.0
  %982 = vmatpush1.msra.mxu0 0.0
  %983 = vmatprep.subr.mxu0 0.0
  %984 = vmatpush1.msra.mxu0 0.0
  %985 = vmatprep.subr.mxu0 0.0
  %986 = vmatpush1.msra.mxu0 0.0
  %987 = vmatprep.subr.mxu0 0.0
  %988 = vmatpush1.msra.mxu0 0.0
  %989 = vmatprep.subr.mxu0 0.0
  %990 = vmatpush1.msra.mxu0 0.0
  %991 = vmatprep.subr.mxu0 0.0
  %992 = vmatpush1.msra.mxu0 0.0
  %993 = vmatprep.subr.mxu0 0.0
  %994 = vmatpush1.msra.mxu0 0.0
  %995 = vmatprep.subr.mxu0 0.0
  %996 = vmatpush1.msra.mxu0 0.0
  %997 = vmatprep.subr.mxu0 0.0
  %998 = vmatpush1.msra.mxu0 0.0
  %999 = vmatprep.subr.mxu0 0.0
  %1000 = vmatpush1.msra.mxu0 0.0
  %1001 = vmatprep.subr.mxu0 0.0
  %1002 = vmatpush1.msra.mxu0 %v937
  %1003 = vmatprep.subr.mxu0 0.0
  %1004 = vmatpush2.msra.mxu0 0.0
  %1005 = vmatprep.subr.mxu0 0.0
  %1006 = vmatpush2.msra.mxu0 0.0
  %1007 = vmatprep.subr.mxu0 0.0
  %1008 = vmatpush2.msra.mxu0 0.0
  %1009 = vmatprep.subr.mxu0 0.0
  %1010 = vmatpush2.msra.mxu0 0.0
  %1011 = vmatprep.subr.mxu0 0.0
  %1012 = vmatpush2.msra.mxu0 0.0
  %1013 = vmatprep.subr.mxu0 0.0
  %1014 = vmatpush2.msra.mxu0 0.0
  %1015 = vmatprep.subr.mxu0 0.0
  %1016 = vmatpush2.msra.mxu0 0.0
  %1017 = vmatprep.subr.mxu0 0.0
  %1018 = vmatpush2.msra.mxu0 0.0
  %1019 = vmatprep.subr.mxu0 0.0
  %1020 = vmatpush2.msra.mxu0 0.0
  %1021 = vmatprep.subr.mxu0 0.0
  %1022 = vmatpush2.msra.mxu0 0.0
  %1023 = vmatprep.subr.mxu0 0.0
  %1024 = vmatpush2.msra.mxu0 0.0
  %1025 = vmatprep.subr.mxu0 0.0
  %1026 = vmatpush2.msra.mxu0 0.0
  %1027 = vmatprep.subr.mxu0 0.0
  %1028 = vmatpush2.msra.mxu0 0.0
  %1029 = vmatprep.subr.mxu0 0.0
  %1030 = vmatpush2.msra.mxu0 0.0
  %1031 = vmatprep.subr.mxu0 0.0
  %1032 = vmatpush2.msra.mxu0 0.0
  %1033 = vmatprep.subr.mxu0 0.0
  %1034 = vmatpush2.msra.mxu0 0.0
  %1035 = vmatprep.mubr.f32.mxu0 0.0
  %1036 = vmatmul.mubr.f32.gmra.mxu0 %v960
  %v1037 = vpop.f32.mrf.mxu0
  %v1038 = vadd.f32 %v941, %v1037
  %v1039 = vpop.f32.mrf.mxu0
  %1040 = vmatprep.mubr.f32.mxu0 0.0
  %1041 = vmatmul.mubr.f32.gmra.mxu0 %v963
  %v1042 = vpop.f32.mrf.mxu0
  %v1043 = vadd.f32 %v946, %v1042
  %v1044 = vpop.f32.mrf.mxu0
  %1045 = vmatprep.mubr.f32.mxu0 0.0
  %1046 = vmatmul.mubr.f32.gmra.mxu0 %v966
  %v1047 = vpop.f32.mrf.mxu0
  %v1048 = vadd.f32 %v951, %v1047
  %v1049 = vpop.f32.mrf.mxu0
  %1050 = vmatprep.mubr.f32.mxu0 0.0
  %1051 = vmatmul.mubr.f32.gmra.mxu0 %v969
  %v1052 = vpop.f32.mrf.mxu0
  %v1053 = vadd.f32 %v956, %v1052
  %v1054 = vpop.f32.mrf.mxu0
  %1055 = vdwg.mxu0
  %v1056 = vsub.f32 0.0, %v1038
  %v1057 = vsub.f32 0.0, %v1043
  %v1058 = vsub.f32 0.0, %v1048
  %v1059 = vsub.f32 0.0, %v1053
  %v1060 = vmul.f32 %v1056, 1.442695
  %v1061 = vpow.pop %v1060
  %v1062 = vmul.f32 %v1057, 1.442695
  %v1063 = vpow.pop %v1062
  %v1064 = vmul.f32 %v1058, 1.442695
  %v1065 = vpow.pop %v1064
  %v1066 = vmul.f32 %v1059, 1.442695
  %v1067 = vpow.pop %v1066
  %v1068 = vadd.f32 %v1061, 1.0
  %v1069 = vadd.f32 %v1063, 1.0
  %v1070 = vadd.f32 %v1065, 1.0
  %v1071 = vadd.f32 %v1067, 1.0
  %v1072 = vrcp.pop %v1068
  %v1073 = vmul.f32 1.0, %v1072
  %v1074 = vrcp.pop %v1069
  %v1075 = vmul.f32 1.0, %v1074
  %v1076 = vrcp.pop %v1070
  %v1077 = vmul.f32 1.0, %v1076
  %v1078 = vrcp.pop %v1071
  %v1079 = vmul.f32 1.0, %v1078
  %1084 = vrot.lane.b32.xlu0 %v1073, 2
  %v1085 = vpop.permute.xlu0 %1084
  %1086 = vrot.lane.b32.xlu0 %v1075, 2
  %v1087 = vpop.permute.xlu0 %1086
  %1088 = vrot.lane.b32.xlu0 %v1077, 2
  %v1089 = vpop.permute.xlu0 %1088
  %1090 = vrot.lane.b32.xlu0 %v1079, 2
  %v1091 = vpop.permute.xlu0 %1090
  %1100 = vrot.lane.b32.xlu0 %v794, 66
  %v1101 = vpop.permute.xlu0 %1100
  %1102 = vrot.lane.b32.xlu0 %v795, 66
  %v1103 = vpop.permute.xlu0 %1102
  %1104 = vrot.lane.b32.xlu0 %v796, 66
  %v1105 = vpop.permute.xlu0 %1104
  %1106 = vrot.lane.b32.xlu0 %v797, 66
  %v1107 = vpop.permute.xlu0 %1106
  %1116 = vrot.lane.b32.xlu0 %v798, 2
  %v1117 = vpop.permute.xlu0 %1116
  %1118 = vrot.lane.b32.xlu0 %v799, 2
  %v1119 = vpop.permute.xlu0 %1118
  %1120 = vrot.lane.b32.xlu0 %v800, 2
  %v1121 = vpop.permute.xlu0 %1120
  %1122 = vrot.lane.b32.xlu0 %v801, 2
  %v1123 = vpop.permute.xlu0 %1122
  %vm1128 = vcmask 15360
  %v1129 = vsel %vm1128, %v852, %v1085
  %v1130 = vsel %vm1128, %v854, %v1087
  %v1131 = vsel %vm1128, %v856, %v1089
  %v1132 = vsel %vm1128, %v858, %v1091
  %vm1133 = vcmask 539648
  %v1134 = vsel %vm1133, %v1129, %v1101
  %v1135 = vsel %vm1133, %v1130, %v1103
  %v1136 = vsel %vm1133, %v1131, %v1105
  %v1137 = vsel %vm1133, %v1132, %v1107
  %v1138 = vsel %vm1128, %v1101, %v1117
  %v1139 = vsel %vm1128, %v1103, %v1119
  %v1140 = vsel %vm1128, %v1105, %v1121
  %v1141 = vsel %vm1128, %v1107, %v1123
  %1143 = vset.pattern.permute.xlu0 0
  %1144 = vperm.xlu0 %1143, %v99
  %v1145 = vpop.permute.xlu0 %1144
  %1148 = vset.pattern.permute.xlu0 0
  %1149 = vperm.xlu0 %1148, %v100
  %v1150 = vpop.permute.xlu0 %1149
  %1153 = vset.pattern.permute.xlu0 0
  %1154 = vperm.xlu0 %1153, %v101
  %v1155 = vpop.permute.xlu0 %1154
  %1158 = vset.pattern.permute.xlu0 0
  %1159 = vperm.xlu0 %1158, %v102
  %v1160 = vpop.permute.xlu0 %1159
  %v1163 = vsel %vm155, %v54, 0
  %v1166 = vsel %vm155, %v55, 0
  %v1169 = vsel %vm155, %v56, 0
  %v1172 = vsel %vm155, %v57, 0
  %1174 = vmatprep.subr.mxu0 0.0
  %1175 = vmatpush1.msra.mxu0 0.0
  %1176 = vmatprep.subr.mxu0 0.0
  %1177 = vmatpush1.msra.mxu0 0.0
  %1178 = vmatprep.subr.mxu0 0.0
  %1179 = vmatpush1.msra.mxu0 0.0
  %1180 = vmatprep.subr.mxu0 0.0
  %1181 = vmatpush1.msra.mxu0 0.0
  %1182 = vmatprep.subr.mxu0 0.0
  %1183 = vmatpush1.msra.mxu0 0.0
  %1184 = vmatprep.subr.mxu0 0.0
  %1185 = vmatpush1.msra.mxu0 0.0
  %1186 = vmatprep.subr.mxu0 0.0
  %1187 = vmatpush1.msra.mxu0 0.0
  %1188 = vmatprep.subr.mxu0 0.0
  %1189 = vmatpush1.msra.mxu0 0.0
  %1190 = vmatprep.subr.mxu0 0.0
  %1191 = vmatpush1.msra.mxu0 0.0
  %1192 = vmatprep.subr.mxu0 0.0
  %1193 = vmatpush1.msra.mxu0 0.0
  %1194 = vmatprep.subr.mxu0 0.0
  %1195 = vmatpush1.msra.mxu0 0.0
  %1196 = vmatprep.subr.mxu0 0.0
  %1197 = vmatpush1.msra.mxu0 0.0
  %1198 = vmatprep.subr.mxu0 %v1141
  %1199 = vmatpush1.msra.mxu0 %v1137
  %1200 = vmatprep.subr.mxu0 %v1140
  %1201 = vmatpush1.msra.mxu0 %v1136
  %1202 = vmatprep.subr.mxu0 %v1139
  %1203 = vmatpush1.msra.mxu0 %v1135
  %1204 = vmatprep.subr.mxu0 %v1138
  %1205 = vmatpush1.msra.mxu0 %v1134
  %1206 = vmatprep.subr.mxu0 0.0
  %1207 = vmatpush2.msra.mxu0 0.0
  %1208 = vmatprep.subr.mxu0 0.0
  %1209 = vmatpush2.msra.mxu0 0.0
  %1210 = vmatprep.subr.mxu0 0.0
  %1211 = vmatpush2.msra.mxu0 0.0
  %1212 = vmatprep.subr.mxu0 0.0
  %1213 = vmatpush2.msra.mxu0 0.0
  %1214 = vmatprep.subr.mxu0 0.0
  %1215 = vmatpush2.msra.mxu0 0.0
  %1216 = vmatprep.subr.mxu0 0.0
  %1217 = vmatpush2.msra.mxu0 0.0
  %1218 = vmatprep.subr.mxu0 0.0
  %1219 = vmatpush2.msra.mxu0 0.0
  %1220 = vmatprep.subr.mxu0 0.0
  %1221 = vmatpush2.msra.mxu0 0.0
  %1222 = vmatprep.subr.mxu0 0.0
  %1223 = vmatpush2.msra.mxu0 0.0
  %1224 = vmatprep.subr.mxu0 0.0
  %1225 = vmatpush2.msra.mxu0 0.0
  %1226 = vmatprep.subr.mxu0 0.0
  %1227 = vmatpush2.msra.mxu0 0.0
  %1228 = vmatprep.subr.mxu0 0.0
  %1229 = vmatpush2.msra.mxu0 0.0
  %1230 = vmatprep.subr.mxu0 0.0
  %1231 = vmatpush2.msra.mxu0 0.0
  %1232 = vmatprep.subr.mxu0 0.0
  %1233 = vmatpush2.msra.mxu0 0.0
  %1234 = vmatprep.subr.mxu0 0.0
  %1235 = vmatpush2.msra.mxu0 0.0
  %1236 = vmatprep.subr.mxu0 0.0
  %1237 = vmatpush2.msra.mxu0 0.0
  %1238 = vmatprep.mubr.f32.mxu0 0.0
  %1239 = vmatmul.mubr.f32.gmra.mxu0 %v1163
  %v1240 = vpop.f32.mrf.mxu0
  %v1241 = vadd.f32 %v1145, %v1240
  %v1242 = vpop.f32.mrf.mxu0
  %v1243 = vadd.f32 %v1145, %v1242
  %1244 = vmatprep.mubr.f32.mxu0 0.0
  %1245 = vmatmul.mubr.f32.gmra.mxu0 %v1166
  %v1246 = vpop.f32.mrf.mxu0
  %v1247 = vadd.f32 %v1150, %v1246
  %v1248 = vpop.f32.mrf.mxu0
  %v1249 = vadd.f32 %v1150, %v1248
  %1250 = vmatprep.mubr.f32.mxu0 0.0
  %1251 = vmatmul.mubr.f32.gmra.mxu0 %v1169
  %v1252 = vpop.f32.mrf.mxu0
  %v1253 = vadd.f32 %v1155, %v1252
  %v1254 = vpop.f32.mrf.mxu0
  %v1255 = vadd.f32 %v1155, %v1254
  %1256 = vmatprep.mubr.f32.mxu0 0.0
  %1257 = vmatmul.mubr.f32.gmra.mxu0 %v1172
  %v1258 = vpop.f32.mrf.mxu0
  %v1259 = vadd.f32 %v1160, %v1258
  %v1260 = vpop.f32.mrf.mxu0
  %v1261 = vadd.f32 %v1160, %v1260
  %1262 = vdwg.mxu0
  %v1263 = vlaneseq
  %v1264 = vshrl.u32 %v1263, 7
  %v1265 = vsub.s32 6, %v1264
  %v1266 = vrot.slane %v111, %v1265
  %v1267 = vlaneseq
  %v1268 = vshrl.u32 %v1267, 7
  %v1269 = vsub.s32 6, %v1268
  %v1270 = vrot.slane %v112, %v1269
  %v1271 = vmul.f32 %v1134, %v1266
  %v1272 = vmul.f32 %v1138, %v1270
  %v1273 = vmul.f32 %v1135, %v1266
  %v1274 = vmul.f32 %v1139, %v1270
  %v1275 = vmul.f32 %v1136, %v1266
  %v1276 = vmul.f32 %v1140, %v1270
  %v1277 = vmul.f32 %v1137, %v1266
  %v1278 = vmul.f32 %v1141, %v1270
  %v1279 = vlaneseq
  %v1280 = vshrl.u32 %v1279, 7
  %v1281 = vsub.s32 7, %v1280
  %v1282 = vrot.slane %v111, %v1281
  %v1283 = vlaneseq
  %v1284 = vshrl.u32 %v1283, 7
  %v1285 = vsub.s32 7, %v1284
  %v1286 = vrot.slane %v112, %v1285
  %v1287 = vadd.f32 %v1271, %v1282
  %v1288 = vadd.f32 %v1272, %v1286
  %v1289 = vadd.f32 %v1273, %v1282
  %v1290 = vadd.f32 %v1274, %v1286
  %v1291 = vadd.f32 %v1275, %v1282
  %v1292 = vadd.f32 %v1276, %v1286
  %v1293 = vadd.f32 %v1277, %v1282
  %v1294 = vadd.f32 %v1278, %v1286
  %v1295 = vmax.f32 %v1287, 0.0
  %v1296 = vmax.f32 %v1288, 0.0
  %v1297 = vmax.f32 %v1289, 0.0
  %v1298 = vmax.f32 %v1290, 0.0
  %v1299 = vmax.f32 %v1291, 0.0
  %v1300 = vmax.f32 %v1292, 0.0
  %v1301 = vmax.f32 %v1293, 0.0
  %v1302 = vmax.f32 %v1294, 0.0
  %1304 = vset.pattern.permute.xlu0 0
  %1305 = vperm.xlu0 %1304, %v103
  %v1306 = vpop.permute.xlu0 %1305
  %1309 = vset.pattern.permute.xlu0 0
  %1310 = vperm.xlu0 %1309, %v104
  %v1311 = vpop.permute.xlu0 %1310
  %v1314 = vsel %vm155, %v58, 0
  %v1317 = vsel %vm155, %v59, 0
  %1319 = vmatprep.subr.mxu0 0.0
  %1320 = vmatpush1.msra.mxu0 0.0
  %1321 = vmatprep.subr.mxu0 0.0
  %1322 = vmatpush1.msra.mxu0 0.0
  %1323 = vmatprep.subr.mxu0 0.0
  %1324 = vmatpush1.msra.mxu0 0.0
  %1325 = vmatprep.subr.mxu0 0.0
  %1326 = vmatpush1.msra.mxu0 0.0
  %1327 = vmatprep.subr.mxu0 0.0
  %1328 = vmatpush1.msra.mxu0 0.0
  %1329 = vmatprep.subr.mxu0 0.0
  %1330 = vmatpush1.msra.mxu0 0.0
  %1331 = vmatprep.subr.mxu0 0.0
  %1332 = vmatpush1.msra.mxu0 0.0
  %1333 = vmatprep.subr.mxu0 0.0
  %1334 = vmatpush1.msra.mxu0 0.0
  %1335 = vmatprep.subr.mxu0 0.0
  %1336 = vmatpush1.msra.mxu0 0.0
  %1337 = vmatprep.subr.mxu0 0.0
  %1338 = vmatpush1.msra.mxu0 0.0
  %1339 = vmatprep.subr.mxu0 0.0
  %1340 = vmatpush1.msra.mxu0 0.0
  %1341 = vmatprep.subr.mxu0 0.0
  %1342 = vmatpush1.msra.mxu0 0.0
  %1343 = vmatprep.subr.mxu0 %v1302
  %1344 = vmatpush1.msra.mxu0 %v1301
  %1345 = vmatprep.subr.mxu0 %v1300
  %1346 = vmatpush1.msra.mxu0 %v1299
  %1347 = vmatprep.subr.mxu0 %v1298
  %1348 = vmatpush1.msra.mxu0 %v1297
  %1349 = vmatprep.subr.mxu0 %v1296
  %1350 = vmatpush1.msra.mxu0 %v1295
  %1351 = vmatprep.subr.mxu0 0.0
  %1352 = vmatpush2.msra.mxu0 0.0
  %1353 = vmatprep.subr.mxu0 0.0
  %1354 = vmatpush2.msra.mxu0 0.0
  %1355 = vmatprep.subr.mxu0 0.0
  %1356 = vmatpush2.msra.mxu0 0.0
  %1357 = vmatprep.subr.mxu0 0.0
  %1358 = vmatpush2.msra.mxu0 0.0
  %1359 = vmatprep.subr.mxu0 0.0
  %1360 = vmatpush2.msra.mxu0 0.0
  %1361 = vmatprep.subr.mxu0 0.0
  %1362 = vmatpush2.msra.mxu0 0.0
  %1363 = vmatprep.subr.mxu0 0.0
  %1364 = vmatpush2.msra.mxu0 0.0
  %1365 = vmatprep.subr.mxu0 0.0
  %1366 = vmatpush2.msra.mxu0 0.0
  %1367 = vmatprep.subr.mxu0 0.0
  %1368 = vmatpush2.msra.mxu0 0.0
  %1369 = vmatprep.subr.mxu0 0.0
  %1370 = vmatpush2.msra.mxu0 0.0
  %1371 = vmatprep.subr.mxu0 0.0
  %1372 = vmatpush2.msra.mxu0 0.0
  %1373 = vmatprep.subr.mxu0 0.0
  %1374 = vmatpush2.msra.mxu0 0.0
  %1375 = vmatprep.subr.mxu0 0.0
  %1376 = vmatpush2.msra.mxu0 0.0
  %1377 = vmatprep.subr.mxu0 0.0
  %1378 = vmatpush2.msra.mxu0 0.0
  %1379 = vmatprep.subr.mxu0 0.0
  %1380 = vmatpush2.msra.mxu0 0.0
  %1381 = vmatprep.subr.mxu0 0.0
  %1382 = vmatpush2.msra.mxu0 0.0
  %1383 = vmatprep.mubr.f32.mxu0 0.0
  %1384 = vmatmul.mubr.f32.gmra.mxu0 %v1314
  %v1385 = vpop.f32.mrf.mxu0
  %v1386 = vadd.f32 %v1306, %v1385
  %v1387 = vpop.f32.mrf.mxu0
  %v1388 = vadd.f32 %v1306, %v1387
  %1389 = vmatprep.mubr.f32.mxu0 0.0
  %1390 = vmatmul.mubr.f32.gmra.mxu0 %v1317
  %v1391 = vpop.f32.mrf.mxu0
  %v1392 = vadd.f32 %v1311, %v1391
  %v1393 = vpop.f32.mrf.mxu0
  %v1394 = vadd.f32 %v1311, %v1393
  %1395 = vdwg.mxu0
  %v1396 = vlaneseq
  %v1397 = vshrl.u32 %v1396, 7
  %v1398 = vsub.s32 0, %v1397
  %v1399 = vrot.slane %v113, %v1398
  %v1400 = vlaneseq
  %v1401 = vshrl.u32 %v1400, 7
  %v1402 = vsub.s32 0, %v1401
  %v1403 = vrot.slane %v114, %v1402
  %v1404 = vmul.f32 %v1386, %v1399
  %v1405 = vmul.f32 %v1388, %v1403
  %v1406 = vmul.f32 %v1392, %v1399
  %v1407 = vmul.f32 %v1394, %v1403
  %v1408 = vlaneseq
  %v1409 = vshrl.u32 %v1408, 7
  %v1410 = vsub.s32 1, %v1409
  %v1411 = vrot.slane %v113, %v1410
  %v1412 = vlaneseq
  %v1413 = vshrl.u32 %v1412, 7
  %v1414 = vsub.s32 1, %v1413
  %v1415 = vrot.slane %v114, %v1414
  %v1416 = vadd.f32 %v1404, %v1411
  %v1417 = vadd.f32 %v1405, %v1415
  %v1418 = vadd.f32 %v1406, %v1411
  %v1419 = vadd.f32 %v1407, %v1415
  %v1420 = vmax.f32 %v1416, 0.0
  %v1421 = vmax.f32 %v1417, 0.0
  %v1422 = vmax.f32 %v1418, 0.0
  %v1423 = vmax.f32 %v1419, 0.0
  %1428 = vrot.lane.b32.xlu0 %v1420, 1
  %v1429 = vpop.permute.xlu0 %1428
  %1430 = vrot.lane.b32.xlu0 %v1421, 1
  %v1431 = vpop.permute.xlu0 %1430
  %1432 = vrot.lane.b32.xlu0 %v1422, 1
  %v1433 = vpop.permute.xlu0 %1432
  %1434 = vrot.lane.b32.xlu0 %v1423, 1
  %v1435 = vpop.permute.xlu0 %1434
  %v1436 = vsel %vm542, %v1429, %v1431
  %v1437 = vsel %vm542, %v1433, %v1435
  %v1442 = vsel %vm542, 0.0, %v1429
  %v1443 = vsel %vm542, 0.0, %v1433
  %1444 = vrot.lane.b32.xlu0 %v1420, 127
  %v1445 = vpop.permute.xlu0 %1444
  %1446 = vrot.lane.b32.xlu0 %v1421, 127
  %v1447 = vpop.permute.xlu0 %1446
  %1448 = vrot.lane.b32.xlu0 %v1422, 127
  %v1449 = vpop.permute.xlu0 %1448
  %1450 = vrot.lane.b32.xlu0 %v1423, 127
  %v1451 = vpop.permute.xlu0 %1450
  %vm1452 = vcmask 1039360
  %v1453 = vsel %vm1452, %v1445, %v1447
  %v1454 = vsel %vm1452, %v1449, %v1451
  %vm1459 = vcmask 531456
  %v1460 = vsel %vm1459, %v1447, 0.0
  %v1461 = vsel %vm1459, %v1451, 0.0
  %1463 = vset.pattern.permute.xlu0 0
  %1464 = vperm.xlu0 %1463, %v105
  %v1465 = vpop.permute.xlu0 %1464
  %1468 = vset.pattern.permute.xlu0 0
  %1469 = vperm.xlu0 %1468, %v106
  %v1470 = vpop.permute.xlu0 %1469
  %vm1472 = vcmask 392192
  %v1474 = vsel %vm1472, %v64, 0
  %v1477 = vsel %vm1472, %v65, 0
  %1479 = vmatprep.subr.mxu0 0.0
  %1480 = vmatpush1.msra.mxu0 0.0
  %1481 = vmatprep.subr.mxu0 0.0
  %1482 = vmatpush1.msra.mxu0 0.0
  %1483 = vmatprep.subr.mxu0 0.0
  %1484 = vmatpush1.msra.mxu0 0.0
  %1485 = vmatprep.subr.mxu0 0.0
  %1486 = vmatpush1.msra.mxu0 0.0
  %1487 = vmatprep.subr.mxu0 0.0
  %1488 = vmatpush1.msra.mxu0 0.0
  %1489 = vmatprep.subr.mxu0 0.0
  %1490 = vmatpush1.msra.mxu0 0.0
  %1491 = vmatprep.subr.mxu0 0.0
  %1492 = vmatpush1.msra.mxu0 0.0
  %1493 = vmatprep.subr.mxu0 0.0
  %1494 = vmatpush1.msra.mxu0 0.0
  %1495 = vmatprep.subr.mxu0 0.0
  %1496 = vmatpush1.msra.mxu0 0.0
  %1497 = vmatprep.subr.mxu0 0.0
  %1498 = vmatpush1.msra.mxu0 0.0
  %1499 = vmatprep.subr.mxu0 %v1461
  %1500 = vmatpush1.msra.mxu0 %v1454
  %1501 = vmatprep.subr.mxu0 %v1460
  %1502 = vmatpush1.msra.mxu0 %v1453
  %1503 = vmatprep.subr.mxu0 %v1423
  %1504 = vmatpush1.msra.mxu0 %v1422
  %1505 = vmatprep.subr.mxu0 %v1421
  %1506 = vmatpush1.msra.mxu0 %v1420
  %1507 = vmatprep.subr.mxu0 %v1437
  %1508 = vmatpush1.msra.mxu0 %v1443
  %1509 = vmatprep.subr.mxu0 %v1436
  %1510 = vmatpush1.msra.mxu0 %v1442
  %1511 = vmatprep.subr.mxu0 0.0
  %1512 = vmatpush2.msra.mxu0 0.0
  %1513 = vmatprep.subr.mxu0 0.0
  %1514 = vmatpush2.msra.mxu0 0.0
  %1515 = vmatprep.subr.mxu0 0.0
  %1516 = vmatpush2.msra.mxu0 0.0
  %1517 = vmatprep.subr.mxu0 0.0
  %1518 = vmatpush2.msra.mxu0 0.0
  %1519 = vmatprep.subr.mxu0 0.0
  %1520 = vmatpush2.msra.mxu0 0.0
  %1521 = vmatprep.subr.mxu0 0.0
  %1522 = vmatpush2.msra.mxu0 0.0
  %1523 = vmatprep.subr.mxu0 0.0
  %1524 = vmatpush2.msra.mxu0 0.0
  %1525 = vmatprep.subr.mxu0 0.0
  %1526 = vmatpush2.msra.mxu0 0.0
  %1527 = vmatprep.subr.mxu0 0.0
  %1528 = vmatpush2.msra.mxu0 0.0
  %1529 = vmatprep.subr.mxu0 0.0
  %1530 = vmatpush2.msra.mxu0 0.0
  %1531 = vmatprep.subr.mxu0 0.0
  %1532 = vmatpush2.msra.mxu0 0.0
  %1533 = vmatprep.subr.mxu0 0.0
  %1534 = vmatpush2.msra.mxu0 0.0
  %1535 = vmatprep.subr.mxu0 0.0
  %1536 = vmatpush2.msra.mxu0 0.0
  %1537 = vmatprep.subr.mxu0 0.0
  %1538 = vmatpush2.msra.mxu0 0.0
  %1539 = vmatprep.subr.mxu0 0.0
  %1540 = vmatpush2.msra.mxu0 0.0
  %1541 = vmatprep.subr.mxu0 0.0
  %1542 = vmatpush2.msra.mxu0 0.0
  %1543 = vmatprep.mubr.f32.mxu0 0.0
  %1544 = vmatmul.mubr.f32.gmra.mxu0 %v1474
  %v1545 = vpop.f32.mrf.mxu0
  %v1546 = vadd.f32 %v1465, %v1545
  %v1547 = vpop.f32.mrf.mxu0
  %v1548 = vadd.f32 %v1465, %v1547
  %1549 = vmatprep.mubr.f32.mxu0 0.0
  %1550 = vmatmul.mubr.f32.gmra.mxu0 %v1477
  %v1551 = vpop.f32.mrf.mxu0
  %v1552 = vadd.f32 %v1470, %v1551
  %v1553 = vpop.f32.mrf.mxu0
  %v1554 = vadd.f32 %v1470, %v1553
  %1555 = vdwg.mxu0
  %v1556 = vlaneseq
  %v1557 = vshrl.u32 %v1556, 7
  %v1558 = vsub.s32 2, %v1557
  %v1559 = vrot.slane %v113, %v1558
  %v1560 = vlaneseq
  %v1561 = vshrl.u32 %v1560, 7
  %v1562 = vsub.s32 2, %v1561
  %v1563 = vrot.slane %v114, %v1562
  %v1564 = vmul.f32 %v1546, %v1559
  %v1565 = vmul.f32 %v1548, %v1563
  %v1566 = vmul.f32 %v1552, %v1559
  %v1567 = vmul.f32 %v1554, %v1563
  %v1568 = vlaneseq
  %v1569 = vshrl.u32 %v1568, 7
  %v1570 = vsub.s32 3, %v1569
  %v1571 = vrot.slane %v113, %v1570
  %v1572 = vlaneseq
  %v1573 = vshrl.u32 %v1572, 7
  %v1574 = vsub.s32 3, %v1573
  %v1575 = vrot.slane %v114, %v1574
  %v1576 = vadd.f32 %v1564, %v1571
  %v1577 = vadd.f32 %v1565, %v1575
  %v1578 = vadd.f32 %v1566, %v1571
  %v1579 = vadd.f32 %v1567, %v1575
  %v1580 = vmax.f32 %v1576, 0.0
  %v1581 = vmax.f32 %v1577, 0.0
  %v1582 = vmax.f32 %v1578, 0.0
  %v1583 = vmax.f32 %v1579, 0.0
  %1585 = vset.pattern.permute.xlu0 0
  %1586 = vperm.xlu0 %1585, %v107
  %v1587 = vpop.permute.xlu0 %1586
  %1590 = vset.pattern.permute.xlu0 0
  %1591 = vperm.xlu0 %1590, %v108
  %v1592 = vpop.permute.xlu0 %1591
  %1595 = vset.pattern.permute.xlu0 0
  %1596 = vperm.xlu0 %1595, %v109
  %v1597 = vpop.permute.xlu0 %1596
  %1600 = vset.pattern.permute.xlu0 0
  %1601 = vperm.xlu0 %1600, %v110
  %v1602 = vpop.permute.xlu0 %1601
  %vm1604 = vcmask 130048
  %v1606 = vsel %vm1604, %v66, 0
  %v1609 = vsel %vm1604, %v67, 0
  %v1612 = vsel %vm1604, %v68, 0
  %v1615 = vsel %vm1604, %v69, 0
  %1617 = vmatprep.subr.mxu0 0.0
  %1618 = vmatpush1.msra.mxu0 0.0
  %1619 = vmatprep.subr.mxu0 0.0
  %1620 = vmatpush1.msra.mxu0 0.0
  %1621 = vmatprep.subr.mxu0 0.0
  %1622 = vmatpush1.msra.mxu0 0.0
  %1623 = vmatprep.subr.mxu0 0.0
  %1624 = vmatpush1.msra.mxu0 0.0
  %1625 = vmatprep.subr.mxu0 0.0
  %1626 = vmatpush1.msra.mxu0 0.0
  %1627 = vmatprep.subr.mxu0 0.0
  %1628 = vmatpush1.msra.mxu0 0.0
  %1629 = vmatprep.subr.mxu0 0.0
  %1630 = vmatpush1.msra.mxu0 0.0
  %1631 = vmatprep.subr.mxu0 0.0
  %1632 = vmatpush1.msra.mxu0 0.0
  %1633 = vmatprep.subr.mxu0 0.0
  %1634 = vmatpush1.msra.mxu0 0.0
  %1635 = vmatprep.subr.mxu0 0.0
  %1636 = vmatpush1.msra.mxu0 0.0
  %1637 = vmatprep.subr.mxu0 0.0
  %1638 = vmatpush1.msra.mxu0 0.0
  %1639 = vmatprep.subr.mxu0 0.0
  %1640 = vmatpush1.msra.mxu0 0.0
  %1641 = vmatprep.subr.mxu0 0.0
  %1642 = vmatpush1.msra.mxu0 0.0
  %1643 = vmatprep.subr.mxu0 0.0
  %1644 = vmatpush1.msra.mxu0 0.0
  %1645 = vmatprep.subr.mxu0 %v1583
  %1646 = vmatpush1.msra.mxu0 %v1582
  %1647 = vmatprep.subr.mxu0 %v1581
  %1648 = vmatpush1.msra.mxu0 %v1580
  %1649 = vmatprep.subr.mxu0 0.0
  %1650 = vmatpush2.msra.mxu0 0.0
  %1651 = vmatprep.subr.mxu0 0.0
  %1652 = vmatpush2.msra.mxu0 0.0
  %1653 = vmatprep.subr.mxu0 0.0
  %1654 = vmatpush2.msra.mxu0 0.0
  %1655 = vmatprep.subr.mxu0 0.0
  %1656 = vmatpush2.msra.mxu0 0.0
  %1657 = vmatprep.subr.mxu0 0.0
  %1658 = vmatpush2.msra.mxu0 0.0
  %1659 = vmatprep.subr.mxu0 0.0
  %1660 = vmatpush2.msra.mxu0 0.0
  %1661 = vmatprep.subr.mxu0 0.0
  %1662 = vmatpush2.msra.mxu0 0.0
  %1663 = vmatprep.subr.mxu0 0.0
  %1664 = vmatpush2.msra.mxu0 0.0
  %1665 = vmatprep.subr.mxu0 0.0
  %1666 = vmatpush2.msra.mxu0 0.0
  %1667 = vmatprep.subr.mxu0 0.0
  %1668 = vmatpush2.msra.mxu0 0.0
  %1669 = vmatprep.subr.mxu0 0.0
  %1670 = vmatpush2.msra.mxu0 0.0
  %1671 = vmatprep.subr.mxu0 0.0
  %1672 = vmatpush2.msra.mxu0 0.0
  %1673 = vmatprep.subr.mxu0 0.0
  %1674 = vmatpush2.msra.mxu0 0.0
  %1675 = vmatprep.subr.mxu0 0.0
  %1676 = vmatpush2.msra.mxu0 0.0
  %1677 = vmatprep.subr.mxu0 0.0
  %1678 = vmatpush2.msra.mxu0 0.0
  %1679 = vmatprep.subr.mxu0 0.0
  %1680 = vmatpush2.msra.mxu0 0.0
  %1681 = vmatprep.mubr.f32.mxu0 0.0
  %1682 = vmatmul.mubr.f32.gmra.mxu0 %v1606
  %v1683 = vpop.f32.mrf.mxu0
  %v1684 = vadd.f32 %v1587, %v1683
  %v1685 = vpop.f32.mrf.mxu0
  %v1686 = vadd.f32 %v1587, %v1685
  %1687 = vmatprep.mubr.f32.mxu0 0.0
  %1688 = vmatmul.mubr.f32.gmra.mxu0 %v1609
  %v1689 = vpop.f32.mrf.mxu0
  %v1690 = vadd.f32 %v1592, %v1689
  %v1691 = vpop.f32.mrf.mxu0
  %v1692 = vadd.f32 %v1592, %v1691
  %1693 = vmatprep.mubr.f32.mxu0 0.0
  %1694 = vmatmul.mubr.f32.gmra.mxu0 %v1612
  %v1695 = vpop.f32.mrf.mxu0
  %v1696 = vadd.f32 %v1597, %v1695
  %v1697 = vpop.f32.mrf.mxu0
  %v1698 = vadd.f32 %v1597, %v1697
  %1699 = vmatprep.mubr.f32.mxu0 0.0
  %1700 = vmatmul.mubr.f32.gmra.mxu0 %v1615
  %v1701 = vpop.f32.mrf.mxu0
  %v1702 = vadd.f32 %v1602, %v1701
  %v1703 = vpop.f32.mrf.mxu0
  %v1704 = vadd.f32 %v1602, %v1703
  %1705 = vdwg.mxu0
  %v1706 = vadd.f32 %v1684, %v1241
  %v1707 = vadd.f32 %v1686, %v1243
  %v1708 = vadd.f32 %v1690, %v1247
  %v1709 = vadd.f32 %v1692, %v1249
  %v1710 = vadd.f32 %v1696, %v1253
  %v1711 = vadd.f32 %v1698, %v1255
  %v1712 = vadd.f32 %v1702, %v1259
  %v1713 = vadd.f32 %v1704, %v1261
  %v1714 = vld [vmem:[%s5] sm:$0xff]
  %v1715 = vld [vmem:[%s5 + $0x8] sm:$0xff]
  %v1716 = vld [vmem:[%s5 + $0x10] sm:$0xff]
  %v1717 = vld [vmem:[%s5 + $0x18] sm:$0xff]
  %v1718 = vld [vmem:[%s5 + $0x20] sm:$0xff]
  %v1719 = vld [vmem:[%s5 + $0x28] sm:$0xff]
  %v1720 = vld [vmem:[%s5 + $0x30] sm:$0xff]
  %v1721 = vld [vmem:[%s5 + $0x38] sm:$0xff]
  %v1722 = vld [vmem:[%s5 + $0x40] sm:$0xff]
  %v1723 = vld [vmem:[%s5 + $0x48] sm:$0xff]
  %v1724 = vld [vmem:[%s5 + $0x50] sm:$0xff]
  %v1725 = vld [vmem:[%s5 + $0x58] sm:$0xff]
  %v1726 = vld [vmem:[%s5 + $0x60] sm:$0xff]
  %v1727 = vld [vmem:[%s5 + $0x68] sm:$0xff]
  %v1728 = vld [vmem:[%s5 + $0x70] sm:$0xff]
  %v1729 = vld [vmem:[%s5 + $0x78] sm:$0xff]
  %v1730 = vld [vmem:[%s5 + $0x80] sm:$0xff]
  %v1731 = vld [vmem:[%s5 + $0x88] sm:$0xff]
  %v1732 = vld [vmem:[%s5 + $0x90] sm:$0xff]
  %v1733 = vld [vmem:[%s5 + $0x98] sm:$0xff]
  %v1734 = vld [vmem:[%s5 + $0xa0] sm:$0xff]
  %v1735 = vld [vmem:[%s5 + $0xa8] sm:$0xff]
  %v1736 = vld [vmem:[%s5 + $0xb0] sm:$0xff]
  %v1737 = vld [vmem:[%s5 + $0xb8] sm:$0xff]
  %v1738 = vld [vmem:[%s5 + $0xc0] sm:$0x3]
  %v1739 = vlaneseq
  %v1740 = vshrl.u32 %v1739, 7
  %v1741 = vsub.s32 4, %v1740
  %v1742 = vrot.slane %v113, %v1741
  %v1744 = vsel %vm1133, %v1707, 0
  %v1747 = vsel %vm1133, %v1709, 0
  %v1750 = vsel %vm1133, %v1711, 0
  %v1753 = vsel %vm1133, %v1713, 0
  %vm1755 = vcmask 1041408
  %v1757 = vsel %vm1755, %v1738, 0
  %1759 = vmatprep.subr.mxu0 0.0
  %1760 = vmatpush1.msra.mxu0 %v1729
  %1761 = vmatprep.subr.mxu0 0.0
  %1762 = vmatpush1.msra.mxu0 %v1728
  %1763 = vmatprep.subr.mxu0 0.0
  %1764 = vmatpush1.msra.mxu0 %v1727
  %1765 = vmatprep.subr.mxu0 0.0
  %1766 = vmatpush1.msra.mxu0 %v1726
  %1767 = vmatprep.subr.mxu0 0.0
  %1768 = vmatpush1.msra.mxu0 %v1725
  %1769 = vmatprep.subr.mxu0 0.0
  %1770 = vmatpush1.msra.mxu0 %v1724
  %1771 = vmatprep.subr.mxu0 0.0
  %1772 = vmatpush1.msra.mxu0 %v1723
  %1773 = vmatprep.subr.mxu0 0.0
  %1774 = vmatpush1.msra.mxu0 %v1722
  %1775 = vmatprep.subr.mxu0 0.0
  %1776 = vmatpush1.msra.mxu0 %v1721
  %1777 = vmatprep.subr.mxu0 0.0
  %1778 = vmatpush1.msra.mxu0 %v1720
  %1779 = vmatprep.subr.mxu0 0.0
  %1780 = vmatpush1.msra.mxu0 %v1719
  %1781 = vmatprep.subr.mxu0 0.0
  %1782 = vmatpush1.msra.mxu0 %v1718
  %1783 = vmatprep.subr.mxu0 0.0
  %1784 = vmatpush1.msra.mxu0 %v1717
  %1785 = vmatprep.subr.mxu0 0.0
  %1786 = vmatpush1.msra.mxu0 %v1716
  %1787 = vmatprep.subr.mxu0 0.0
  %1788 = vmatpush1.msra.mxu0 %v1715
  %1789 = vmatprep.subr.mxu0 0.0
  %1790 = vmatpush1.msra.mxu0 %v1714
  %1791 = vmatprep.subr.mxu0 0.0
  %1792 = vmatpush2.msra.mxu0 0.0
  %1793 = vmatprep.subr.mxu0 0.0
  %1794 = vmatpush2.msra.mxu0 0.0
  %1795 = vmatprep.subr.mxu0 0.0
  %1796 = vmatpush2.msra.mxu0 0.0
  %1797 = vmatprep.subr.mxu0 0.0
  %1798 = vmatpush2.msra.mxu0 0.0
  %1799 = vmatprep.subr.mxu0 0.0
  %1800 = vmatpush2.msra.mxu0 0.0
  %1801 = vmatprep.subr.mxu0 0.0
  %1802 = vmatpush2.msra.mxu0 0.0
  %1803 = vmatprep.subr.mxu0 0.0
  %1804 = vmatpush2.msra.mxu0 0.0
  %1805 = vmatprep.subr.mxu0 0.0
  %1806 = vmatpush2.msra.mxu0 %v1757
  %1807 = vmatprep.subr.mxu0 0.0
  %1808 = vmatpush2.msra.mxu0 %v1737
  %1809 = vmatprep.subr.mxu0 0.0
  %1810 = vmatpush2.msra.mxu0 %v1736
  %1811 = vmatprep.subr.mxu0 0.0
  %1812 = vmatpush2.msra.mxu0 %v1735
  %1813 = vmatprep.subr.mxu0 0.0
  %1814 = vmatpush2.msra.mxu0 %v1734
  %1815 = vmatprep.subr.mxu0 0.0
  %1816 = vmatpush2.msra.mxu0 %v1733
  %1817 = vmatprep.subr.mxu0 0.0
  %1818 = vmatpush2.msra.mxu0 %v1732
  %1819 = vmatprep.subr.mxu0 0.0
  %1820 = vmatpush2.msra.mxu0 %v1731
  %1821 = vmatprep.subr.mxu0 0.0
  %1822 = vmatpush2.msra.mxu0 %v1730
  %1823 = vmatprep.mubr.f32.mxu0 %v1744
  %1824 = vmatmul.mubr.f32.gmra.mxu0 %v1706
  %v1825 = vpop.f32.mrf.mxu0
  %v1826 = vadd.f32 %v1742, %v1825
  %v1827 = vpop.f32.mrf.mxu0
  %1828 = vmatprep.mubr.f32.mxu0 %v1747
  %1829 = vmatmul.mubr.f32.gmra.mxu0 %v1708
  %v1830 = vpop.f32.mrf.mxu0
  %v1831 = vadd.f32 %v1742, %v1830
  %v1832 = vpop.f32.mrf.mxu0
  %1833 = vmatprep.mubr.f32.mxu0 %v1750
  %1834 = vmatmul.mubr.f32.gmra.mxu0 %v1710
  %v1835 = vpop.f32.mrf.mxu0
  %v1836 = vadd.f32 %v1742, %v1835
  %v1837 = vpop.f32.mrf.mxu0
  %1838 = vmatprep.mubr.f32.mxu0 %v1753
  %1839 = vmatmul.mubr.f32.gmra.mxu0 %v1712
  %v1840 = vpop.f32.mrf.mxu0
  %v1841 = vadd.f32 %v1742, %v1840
  %v1842 = vpop.f32.mrf.mxu0
  %1843 = vdwg.mxu0
  %vm1844 = vcmask 39936
  %1845 = vst.msk [vmem:[%s8] sm:$0xff] %vm1844, %v1826
  %1846 = vst.msk [vmem:[%s8 + $0x8] sm:$0xff] %vm1844, %v1831
  %1847 = vst.msk [vmem:[%s8 + $0x10] sm:$0xff] %vm1844, %v1836
  %1848 = vst.msk [vmem:[%s8 + $0x18] sm:$0xff] %vm1844, %v1841
  // Predicated region
  $region34: #{transfuse_s_forward.1} parent=0 // pred_check
    _
  $region35: #{transfuse_s_forward.1} parent=0 // pred_check_branch
    %1850 = sbr.rel (0) target = $region37
  $region36: #{transfuse_s_forward.1} parent=0 // pred_region
    _
  $region37: #{transfuse_s_forward.1} parent=0 // pred_fallthru
    _
  // Predicated region
  $region38: #{transfuse_s_forward.1} parent=0 // pred_check
    _
  $region39: #{transfuse_s_forward.1} parent=0 // pred_check_branch
    %1852 = sbr.rel (0) target = $region41
  $region40: #{transfuse_s_forward.1} parent=0 // pred_region
    _
  $region41: #{transfuse_s_forward.1} parent=0 // pred_fallthru
    _

</llo_original>
